<compile_context>
chip_gen: v6e
topology: v6e:2x2x1
jax: 0.10.0
libtpu: 0.0.40
codegen_flags: <defaults>
</compile_context>

<pallas_src>
import numpy as np
import jax
import jax.numpy as jnp
from jax import lax
from jax.experimental import pallas as pl
from jax.experimental.pallas import tpu as pltpu

# ----------------------------- small GPT-J config ---------------------------
VOCAB = 128
N_EMBD = 64
N_HEAD = 4
HEAD_SIZE = N_EMBD // N_HEAD          # 16
ROTARY_DIM = 8                        # even, <= HEAD_SIZE
HALF_ROT = ROTARY_DIM // 2            # 4
N_LAYER = 2
N_INNER = 4 * N_EMBD                  # config.n_inner is None -> 4 * n_embd
LN_EPS = 1e-5
ROPE_THETA = 10000.0
SCALING = HEAD_SIZE ** -0.5

MM_DTYPE = jnp.bfloat16               # MXU input dtype; accumulation is f32
NEG_INF = -1e30                       # additive mask value (f32 scores only)


# ------------------------------ in-kernel helpers ----------------------------
def _layernorm_f32(x, g, b, eps=LN_EPS):
    mean = jnp.mean(x, axis=-1, keepdims=True)
    xc = x - mean
    var = jnp.mean(xc * xc, axis=-1, keepdims=True)
    return xc * jax.lax.rsqrt(var + eps) * g + b


def _gelu_new(x):
    # GPT-J "gelu_new": 0.5*x*(1+tanh(sqrt(2/pi)*(x+0.044715*x^3)))
    return 0.5 * x * (1.0 + jnp.tanh(0.7978845608028654 * (x + 0.044715 * x * x * x)))


# ------------------------------ fused model kernel ---------------------------
def _gptj_fused_kernel(
    hid_ref,        # [T, D]   f32   initial hidden (embeddings), read at layer 0
    cos_ref,        # [T, Dh]  f32   per-head rotary cos (de-interleaved layout)
    sin_ref,        # [T, Dh]  f32   per-head signed sin (0 on pass-through dims)
    ln1_g_ref,      # [1, 1, D]  f32   (layer-indexed)
    ln1_b_ref,      # [1, 1, D]  f32
    wqkv_ref,       # [1, D, 3D] bf16  Q/K columns permuted + scale folded into Q
    wo_ref,         # [1, D, D]  bf16
    w_fi_ref,       # [1, D, I]  bf16
    b_fi_ref,       # [1, 1, I]  f32
    w_fo_ref,       # [1, I, D]  bf16
    b_fo_ref,       # [1, 1, D]  f32
    lnf_g_ref,      # [1, D]  f32
    lnf_b_ref,      # [1, D]  f32
    out_ref,        # [T, D]  f32   written on the last layer only
    h_scratch,      # [T, D]  f32   VMEM-resident hidden state (carried across layers)
    attn_scratch,   # [T, D]  f32   per-head attention outputs at static column offsets
):
    layer = pl.program_id(0)

    @pl.when(layer == 0)
    def _():
        h_scratch[...] = hid_ref[...]

    h = h_scratch[...]                                        # residual, f32 [T, D]
    T = h.shape[0]

    # ---------------- LayerNorm 1 (f32) ----------------
    ln1 = _layernorm_f32(h, ln1_g_ref[0], ln1_b_ref[0])       # [T, D]
    ln1_mm = ln1.astype(MM_DTYPE)

    # ---------------- QKV projection (bias-free; softmax scale folded in) ----
    qkv = jnp.dot(ln1_mm, wqkv_ref[0], preferred_element_type=jnp.float32)  # [T, 3D]

    # ---------------- rotary tables + causal mask (in-kernel, no HBM input) --
    cos = cos_ref[...]                                        # [T, Dh]
    sin = sin_ref[...]                                        # [T, Dh], signed, 0 on pass dims
    rows = lax.broadcasted_iota(jnp.int32, (T, T), 0)
    cols = lax.broadcasted_iota(jnp.int32, (T, T), 1)
    mask = jnp.where(cols <= rows, 0.0, NEG_INF).astype(jnp.float32)        # [T, T]

    # ---------------- per-head rotary + causal attention ----------------
    # TODO(synk): at real dims (Dh=256, H=16) batch heads into one 3-D
    #             dot_general / flash loop; at Dh=16 the per-head 2-D matmuls
    #             with static slices are kept for robust lowering.
    dn = (((1,), (1,)), ((), ()))                             # q @ k^T (contract last dims)
    for hd in range(N_HEAD):
        lo = hd * HEAD_SIZE
        qh = qkv[:, lo:lo + HEAD_SIZE]                        # [T, Dh] f32
        kh = qkv[:, N_EMBD + lo:N_EMBD + lo + HEAD_SIZE]
        vh = qkv[:, 2 * N_EMBD + lo:2 * N_EMBD + lo + HEAD_SIZE]

        # GPT-J interleaved rotary in the de-interleaved head layout
        # [a(4) | b(4) | pass(8)]: out = x*cos + [b, a, pass]*signed_sin
        qh_sw = jnp.concatenate(
            [qh[:, HALF_ROT:ROTARY_DIM], qh[:, 0:HALF_ROT], qh[:, ROTARY_DIM:]], axis=-1)
        kh_sw = jnp.concatenate(
            [kh[:, HALF_ROT:ROTARY_DIM], kh[:, 0:HALF_ROT], kh[:, ROTARY_DIM:]], axis=-1)
        qh = qh * cos + qh_sw * sin
        kh = kh * cos + kh_sw * sin

        s = lax.dot_general(qh.astype(MM_DTYPE), kh.astype(MM_DTYPE), dn,
                            preferred_element_type=jnp.float32) + mask      # [T, T]
        m = jnp.max(s, axis=-1, keepdims=True)
        p = jnp.exp(s - m)
        l = jnp.sum(p, axis=-1, keepdims=True)
        o = jnp.dot(p.astype(MM_DTYPE), vh.astype(MM_DTYPE),
                    preferred_element_type=jnp.float32)                     # [T, Dh]
        attn_scratch[:, lo:lo + HEAD_SIZE] = o * pl.reciprocal(l, approx=True)

    # ---------------- out_proj (bias-free, single [T,D]@[D,D] MXU call) ------
    attn_out = jnp.dot(attn_scratch[...].astype(MM_DTYPE), wo_ref[0],
                       preferred_element_type=jnp.float32)

    # ---------------- MLP: fc_in -> gelu_new -> fc_out ----------------
    inner = jnp.dot(ln1_mm, w_fi_ref[0], preferred_element_type=jnp.float32) + b_fi_ref[0]
    inner = _gelu_new(inner)
    mlp_out = jnp.dot(inner.astype(MM_DTYPE), w_fo_ref[0],
                      preferred_element_type=jnp.float32) + b_fo_ref[0]

    # ---------------- residual ----------------
    h_new = attn_out + mlp_out + h
    h_scratch[...] = h_new                                    # TODO(synk): bf16 on v7x at real T,D

    # ---------------- final LayerNorm, write output on the last layer -------
    @pl.when(layer == pl.num_programs(0) - 1)
    def _():
        out_ref[...] = _layernorm_f32(h_new, lnf_g_ref[...], lnf_b_ref[...])


# ------------------------------ host-side (load-time) preparation -------------
def _qk_col_perm():
    """Per-head column permutation: [even rotary dims, odd rotary dims, pass dims]."""
    perm = []
    for h in range(N_HEAD):
        base = h * HEAD_SIZE
        perm += [base + d for d in range(0, ROTARY_DIM, 2)]
        perm += [base + d for d in range(1, ROTARY_DIM, 2)]
        perm += [base + d for d in range(ROTARY_DIM, HEAD_SIZE)]
    return np.asarray(perm, np.int32)


_QK_PERM = _qk_col_perm()


def prepare_kernel_params(params):
    """One-time weight prep: permute Q/K columns to the de-interleaved rotary
    layout and fold the softmax scale into Q (both commute with attention)."""
    D = N_EMBD
    wqkv = params["wqkv"].astype(jnp.float32)                 # [L, D, 3D]
    wq = wqkv[..., 0:D][..., _QK_PERM] * SCALING
    wk = wqkv[..., D:2 * D][..., _QK_PERM]
    wv = wqkv[..., 2 * D:]
    return {
        "wte": params["wte"],
        "ln1_g": params["ln1_g"], "ln1_b": params["ln1_b"],
        "wqkv": jnp.concatenate([wq, wk, wv], axis=-1).astype(MM_DTYPE),
        "wo": params["wo"],
        "w_fc_in": params["w_fc_in"], "b_fc_in": params["b_fc_in"],
        "w_fc_out": params["w_fc_out"], "b_fc_out": params["b_fc_out"],
        "lnf_g": params["lnf_g"], "lnf_b": params["lnf_b"],
    }


def _rotary_tables(positions):
    """[T, HEAD_SIZE] cos / signed-sin tables for the de-interleaved head layout."""
    T = positions.shape[0]
    inv_freq = 1.0 / (ROPE_THETA ** (jnp.arange(HALF_ROT, dtype=jnp.float32) * 2.0 / ROTARY_DIM))
    freqs = positions.astype(jnp.float32)[:, None] * inv_freq[None, :]      # [T, HALF_ROT]
    cos = jnp.cos(freqs)
    sin = jnp.sin(freqs)
    ones = jnp.ones((T, HEAD_SIZE - ROTARY_DIM), jnp.float32)
    zeros = jnp.zeros((T, HEAD_SIZE - ROTARY_DIM), jnp.float32)
    cos_head = jnp.concatenate([cos, cos, ones], axis=-1)                   # [T, 16]
    sin_head = jnp.concatenate([-sin, sin, zeros], axis=-1)                 # [T, 16]
    return cos_head, sin_head


# ------------------------------ model entry point -----------------------------
@jax.jit
def gptj_model(input_ids, position_ids, kparams):
    T = input_ids.shape[0]
    D = N_EMBD

    hidden = jnp.take(kparams["wte"], input_ids, axis=0)       # embedding gather (glue)
    cos, sin = _rotary_tables(position_ids)                    # once per forward

    def resident(l):                                           # resident across layers
        return (0, 0)

    def per_layer(l):                                          # layer-indexed weights
        return (l, 0, 0)

    in_specs = [
        pl.BlockSpec((T, D), resident),                        # hidden (embeddings)
        pl.BlockSpec((T, HEAD_SIZE), resident),                # rotary cos
        pl.BlockSpec((T, HEAD_SIZE), resident),                # rotary signed sin
        pl.BlockSpec((1, 1, D), per_layer),                    # ln1_g
        pl.BlockSpec((1, 1, D), per_layer),                    # ln1_b
        pl.BlockSpec((1, D, 3 * D), per_layer),                # wqkv (permuted, scaled)
        pl.BlockSpec((1, D, D), per_layer),                    # wo
        pl.BlockSpec((1, D, N_INNER), per_layer),              # w_fc_in
        pl.BlockSpec((1, 1, N_INNER), per_layer),              # b_fc_in
        pl.BlockSpec((1, N_INNER, D), per_layer),              # w_fc_out
        pl.BlockSpec((1, 1, D), per_layer),                    # b_fc_out
        pl.BlockSpec((1, D), resident),                        # lnf_g
        pl.BlockSpec((1, D), resident),                        # lnf_b
    ]

    out = pl.pallas_call(
        _gptj_fused_kernel,
        out_shape=jax.ShapeDtypeStruct((T, D), jnp.float32),
        grid=(N_LAYER,),
        in_specs=in_specs,
        out_specs=pl.BlockSpec((T, D), resident),
        scratch_shapes=[pltpu.VMEM((T, D), jnp.float32),       # hidden state
                        pltpu.VMEM((T, D), jnp.float32)],      # attention head outputs
        compiler_params=pltpu.CompilerParams(
            dimension_semantics=("arbitrary",),                # layers are sequential
            vmem_limit_bytes=32 * 1024 * 1024),
    )(
        hidden, cos, sin,
        kparams["ln1_g"], kparams["ln1_b"], kparams["wqkv"], kparams["wo"],
        kparams["w_fc_in"], kparams["b_fc_in"], kparams["w_fc_out"], kparams["b_fc_out"],
        kparams["lnf_g"], kparams["lnf_b"],
    )
    return out


# ------------------------------ pure-JAX reference ----------------------------
def _rotary_ref(x, positions):
    # x: [T, H, Dh]; GPT-J interleaved (is_neox_style=False)
    T, H, _ = x.shape
    inv_freq = 1.0 / (ROPE_THETA ** (jnp.arange(HALF_ROT, dtype=jnp.float32) * 2.0 / ROTARY_DIM))
    freqs = positions.astype(jnp.float32)[:, None] * inv_freq[None, :]
    cos = jnp.cos(freqs)[:, None, :]
    sin = jnp.sin(freqs)[:, None, :]
    x_rot, x_pass = x[..., :ROTARY_DIM], x[..., ROTARY_DIM:]
    x1, x2 = x_rot[..., 0::2], x_rot[..., 1::2]
    o1 = x1 * cos - x2 * sin
    o2 = x1 * sin + x2 * cos
    out = jnp.stack([o1, o2], axis=-1).reshape(T, H, ROTARY_DIM)
    return jnp.concatenate([out, x_pass], axis=-1)


def gptj_reference(input_ids, position_ids, params):
    f32 = jnp.float32
    h = jnp.take(params["wte"], input_ids, axis=0)
    T = h.shape[0]
    row = jnp.arange(T)[:, None]
    col = jnp.arange(T)[None, :]
    for li in range(N_LAYER):
        ln1 = _layernorm_f32(h, params["ln1_g"][li, 0], params["ln1_b"][li, 0])
        qkv = ln1 @ params["wqkv"][li].astype(f32)
        q, k, v = jnp.split(qkv, 3, axis=-1)
        q = _rotary_ref(q.reshape(T, N_HEAD, HEAD_SIZE), position_ids)
        k = _rotary_ref(k.reshape(T, N_HEAD, HEAD_SIZE), position_ids)
        v = v.reshape(T, N_HEAD, HEAD_SIZE)
        s = jnp.einsum("thd,shd->hts", q, k) * SCALING
        s = jnp.where((col <= row)[None], s, NEG_INF)
        p = jax.nn.softmax(s, axis=-1)
        o = jnp.einsum("hts,shd->thd", p, v).reshape(T, N_EMBD)
        attn_out = o @ params["wo"][li].astype(f32)
        inner = _gelu_new(ln1 @ params["w_fc_in"][li].astype(f32) + params["b_fc_in"][li, 0])
        mlp_out = inner @ params["w_fc_out"][li].astype(f32) + params["b_fc_out"][li, 0]
        h = attn_out + mlp_out + h
    return _layernorm_f32(h, params["lnf_g"][0], params["lnf_b"][0])


# ------------------------------ parameter init --------------------------------
def init_params(key):
    scale = 0.02
    D, I, L = N_EMBD, N_INNER, N_LAYER
    ks = jax.random.split(key, 11)
    return {
        "wte": jax.random.normal(ks[0], (VOCAB, D), jnp.float32) * scale,
        "ln1_g": 1.0 + jax.random.normal(ks[5], (L, 1, D), jnp.float32) * scale,
        "ln1_b": jax.random.normal(ks[6], (L, 1, D), jnp.float32) * scale,
        # matmul weights stored [in, out] (== torch weight.T), bf16 for the MXU
        "wqkv": (jax.random.normal(ks[1], (L, D, 3 * D), jnp.float32) * scale).astype(MM_DTYPE),
        "wo": (jax.random.normal(ks[2], (L, D, D), jnp.float32) * scale).astype(MM_DTYPE),
        "w_fc_in": (jax.random.normal(ks[3], (L, D, I), jnp.float32) * scale).astype(MM_DTYPE),
        "b_fc_in": jax.random.normal(ks[7], (L, 1, I), jnp.float32) * scale,
        "w_fc_out": (jax.random.normal(ks[4], (L, I, D), jnp.float32) * scale).astype(MM_DTYPE),
        "b_fc_out": jax.random.normal(ks[8], (L, 1, D), jnp.float32) * scale,
        "lnf_g": 1.0 + jax.random.normal(ks[9], (1, D), jnp.float32) * scale,
        "lnf_b": jax.random.normal(ks[10], (1, D), jnp.float32) * scale,
    }


# ----------------------------------- main --------------------------------------
if __name__ == "__main__":
    key = jax.random.PRNGKey(0)
    params = init_params(key)
    kparams = prepare_kernel_params(params)      # load-time weight prep (perm + scale fold)

    T = 8
    input_ids = jax.random.randint(jax.random.PRNGKey(1), (T,), 0, VOCAB, dtype=jnp.int32)
    position_ids = jnp.arange(T, dtype=jnp.int32)

    out = gptj_model(input_ids, position_ids, kparams)
    out = jax.block_until_ready(out)

    ref = gptj_reference(input_ids, position_ids, params)

    assert out.shape == (T, N_EMBD)
    assert bool(jnp.all(jnp.isfinite(out)))
    # bf16 MXU inputs + approx reciprocal vs. pure-f32 reference => loose tolerance
    assert float(jnp.max(jnp.abs(out - ref))) < 0.1

    print("KERNEL_OK")
</pallas_src>

<mosaic_0001>
module attributes {stable_mosaic.version = 11 : i64} {
  func.func @_gptj_fused_kernel(%arg0: i32, %arg1: memref<8x64xf32, #tpu.memory_space<vmem>>, %arg2: memref<8x16xf32, #tpu.memory_space<vmem>>, %arg3: memref<8x16xf32, #tpu.memory_space<vmem>>, %arg4: memref<1x1x64xf32, #tpu.memory_space<vmem>>, %arg5: memref<1x1x64xf32, #tpu.memory_space<vmem>>, %arg6: memref<1x64x192xbf16, #tpu.memory_space<vmem>>, %arg7: memref<1x64x64xbf16, #tpu.memory_space<vmem>>, %arg8: memref<1x64x256xbf16, #tpu.memory_space<vmem>>, %arg9: memref<1x1x256xf32, #tpu.memory_space<vmem>>, %arg10: memref<1x256x64xbf16, #tpu.memory_space<vmem>>, %arg11: memref<1x1x64xf32, #tpu.memory_space<vmem>>, %arg12: memref<1x64xf32, #tpu.memory_space<vmem>>, %arg13: memref<1x64xf32, #tpu.memory_space<vmem>>, %arg14: memref<8x64xf32, #tpu.memory_space<vmem>>, %arg15: memref<8x64xf32, #tpu.memory_space<vmem>>, %arg16: memref<8x64xf32, #tpu.memory_space<vmem>>) attributes {dimension_semantics = [#tpu.dimension_semantics<arbitrary>], iteration_bounds = array<i64: 2>, scalar_prefetch = 0 : i64, scratch_operands = 2 : i64, tpu.core_type = #tpu.core_type<tc>, window_params = [{pipeline_mode = #tpu.pipeline_mode<synchronous>, transform_indices = @transform_0, window_bounds = array<i64: 8, 64>}, {pipeline_mode = #tpu.pipeline_mode<synchronous>, transform_indices = @transform_1, window_bounds = array<i64: 8, 16>}, {pipeline_mode = #tpu.pipeline_mode<synchronous>, transform_indices = @transform_2, window_bounds = array<i64: 8, 16>}, {transform_indices = @transform_3, window_bounds = array<i64: 1, 1, 64>}, {transform_indices = @transform_4, window_bounds = array<i64: 1, 1, 64>}, {transform_indices = @transform_5, window_bounds = array<i64: 1, 64, 192>}, {transform_indices = @transform_6, window_bounds = array<i64: 1, 64, 64>}, {transform_indices = @transform_7, window_bounds = array<i64: 1, 64, 256>}, {transform_indices = @transform_8, window_bounds = array<i64: 1, 1, 256>}, {transform_indices = @transform_9, window_bounds = array<i64: 1, 256, 64>}, {transform_indices = @transform_10, window_bounds = array<i64: 1, 1, 64>}, {pipeline_mode = #tpu.pipeline_mode<synchronous>, transform_indices = @transform_11, window_bounds = array<i64: 1, 64>}, {pipeline_mode = #tpu.pipeline_mode<synchronous>, transform_indices = @transform_12, window_bounds = array<i64: 1, 64>}, {pipeline_mode = #tpu.pipeline_mode<synchronous>, transform_indices = @transform_13, window_bounds = array<i64: 8, 64>}]} {
    %c0_i32 = arith.constant 0 : i32
    %0 = arith.cmpi eq, %arg0, %c0_i32 : i32
    %1 = arith.extui %0 : i1 to i32
    %c0_i32_0 = arith.constant 0 : i32
    %2 = arith.cmpi ne, %1, %c0_i32_0 : i32
    scf.if %2 {
      %c0_70 = arith.constant 0 : index
      %c0_71 = arith.constant 0 : index
      %219 = vector.load %arg1[%c0_70, %c0_71] : memref<8x64xf32, #tpu.memory_space<vmem>>, vector<8x64xf32>
      %c0_72 = arith.constant 0 : index
      %c0_73 = arith.constant 0 : index
      %220 = vector.load %arg15[%c0_72, %c0_73] : memref<8x64xf32, #tpu.memory_space<vmem>>, vector<8x64xf32>
      tpu.vector_store %arg15[%c0_72, %c0_73], %219 {strides = array<i32>} : memref<8x64xf32, #tpu.memory_space<vmem>>, vector<8x64xf32>,
    } else {
    }
    %c0 = arith.constant 0 : index
    %c0_1 = arith.constant 0 : index
    %3 = vector.load %arg15[%c0, %c0_1] : memref<8x64xf32, #tpu.memory_space<vmem>>, vector<8x64xf32>
    %c0_2 = arith.constant 0 : index
    %c0_3 = arith.constant 0 : index
    %c0_4 = arith.constant 0 : index
    %4 = vector.load %arg4[%c0_2, %c0_3, %c0_4] : memref<1x1x64xf32, #tpu.memory_space<vmem>>, vector<1x1x64xf32>
    %5 = vector.shape_cast %4 : vector<1x1x64xf32> to vector<1x64xf32>
    %c0_5 = arith.constant 0 : index
    %c0_6 = arith.constant 0 : index
    %c0_7 = arith.constant 0 : index
    %6 = vector.load %arg5[%c0_5, %c0_6, %c0_7] : memref<1x1x64xf32, #tpu.memory_space<vmem>>, vector<1x1x64xf32>
    %7 = vector.shape_cast %6 : vector<1x1x64xf32> to vector<1x64xf32>
    %cst = arith.constant dense<0.000000e+00> : vector<8xf32>
    %8 = vector.multi_reduction <add>, %3, %cst [1] : vector<8x64xf32> to vector<8xf32>
    %9 = vector.shape_cast %8 : vector<8xf32> to vector<8x1xf32>
    %cst_8 = arith.constant 6.400000e+01 : f32
    %10 = vector.broadcast %cst_8 : f32 to vector<8x1xf32>
    %11 = arith.divf %9, %10 : vector<8x1xf32>
    %12 = vector.broadcast %11 : vector<8x1xf32> to vector<8x64xf32>
    %13 = arith.subf %3, %12 : vector<8x64xf32>
    %14 = arith.mulf %13, %13 : vector<8x64xf32>
    %cst_9 = arith.constant dense<0.000000e+00> : vector<8xf32>
    %15 = vector.multi_reduction <add>, %14, %cst_9 [1] : vector<8x64xf32> to vector<8xf32>
    %16 = vector.shape_cast %15 : vector<8xf32> to vector<8x1xf32>
    %cst_10 = arith.constant 6.400000e+01 : f32
    %17 = vector.broadcast %cst_10 : f32 to vector<8x1xf32>
    %18 = arith.divf %16, %17 : vector<8x1xf32>
    %cst_11 = arith.constant 9.99999974E-6 : f32
    %19 = vector.broadcast %cst_11 : f32 to vector<8x1xf32>
    %20 = arith.addf %18, %19 : vector<8x1xf32>
    %21 = math.rsqrt %20 : vector<8x1xf32>
    %22 = vector.broadcast %21 : vector<8x1xf32> to vector<8x64xf32>
    %23 = arith.mulf %13, %22 : vector<8x64xf32>
    %24 = vector.broadcast %5 : vector<1x64xf32> to vector<8x64xf32>
    %25 = arith.mulf %23, %24 : vector<8x64xf32>
    %26 = vector.broadcast %7 : vector<1x64xf32> to vector<8x64xf32>
    %27 = arith.addf %25, %26 : vector<8x64xf32>
    %28 = arith.truncf %27 : vector<8x64xf32> to vector<8x64xbf16>
    %c0_12 = arith.constant 0 : index
    %c0_13 = arith.constant 0 : index
    %c0_14 = arith.constant 0 : index
    %29 = vector.load %arg6[%c0_12, %c0_13, %c0_14] : memref<1x64x192xbf16, #tpu.memory_space<vmem>>, vector<1x64x192xbf16>
    %30 = vector.shape_cast %29 : vector<1x64x192xbf16> to vector<64x192xbf16>
    %cst_15 = arith.constant dense<0.000000e+00> : vector<8x192xf32>
    %31 = tpu.matmul %28, %30, %cst_15 {dimension_numbers = #tpu.dot_dimension_numbers<[1], [0], [0], [1], [0, 0, 1, 1], [], []>} : vector<8x64xbf16>, vector<64x192xbf16>, vector<8x192xf32> -> vector<8x192xf32>
    %c0_16 = arith.constant 0 : index
    %c0_17 = arith.constant 0 : index
    %32 = vector.load %arg2[%c0_16, %c0_17] : memref<8x16xf32, #tpu.memory_space<vmem>>, vector<8x16xf32>
    %c0_18 = arith.constant 0 : index
    %c0_19 = arith.constant 0 : index
    %33 = vector.load %arg3[%c0_18, %c0_19] : memref<8x16xf32, #tpu.memory_space<vmem>>, vector<8x16xf32>
    %34 = tpu.iota {dimensions = array<i32: 0>} : vector<8x8xi32>
    %35 = tpu.iota {dimensions = array<i32: 1>} : vector<8x8xi32>
    %36 = arith.cmpi sle, %35, %34 : vector<8x8xi32>
    %cst_20 = arith.constant 0.000000e+00 : f32
    %cst_21 = arith.constant -1.000000e+30 : f32
    %37 = vector.broadcast %cst_20 : f32 to vector<8x8xf32>
    %38 = vector.broadcast %cst_21 : f32 to vector<8x8xf32>
    %39 = arith.select %36, %37, %38 : vector<8x8xi1>, vector<8x8xf32>
    %40 = vector.extract_strided_slice %31 {offsets = [0, 0], sizes = [8, 16], strides = [1, 1]} : vector<8x192xf32> to vector<8x16xf32>
    %41 = vector.extract_strided_slice %31 {offsets = [0, 64], sizes = [8, 16], strides = [1, 1]} : vector<8x192xf32> to vector<8x16xf32>
    %42 = vector.extract_strided_slice %31 {offsets = [0, 128], sizes = [8, 16], strides = [1, 1]} : vector<8x192xf32> to vector<8x16xf32>
    %43 = vector.extract_strided_slice %40 {offsets = [0, 4], sizes = [8, 4], strides = [1, 1]} : vector<8x16xf32> to vector<8x4xf32>
    %44 = vector.extract_strided_slice %40 {offsets = [0, 0], sizes = [8, 4], strides = [1, 1]} : vector<8x16xf32> to vector<8x4xf32>
    %45 = vector.extract_strided_slice %40 {offsets = [0, 8], sizes = [8, 8], strides = [1, 1]} : vector<8x16xf32> to vector<8x8xf32>
    %46 = tpu.concatenate %43, %44, %45 in 1 : vector<8x4xf32>, vector<8x4xf32>, vector<8x8xf32> -> vector<8x16xf32>
    %47 = vector.extract_strided_slice %41 {offsets = [0, 4], sizes = [8, 4], strides = [1, 1]} : vector<8x16xf32> to vector<8x4xf32>
    %48 = vector.extract_strided_slice %41 {offsets = [0, 0], sizes = [8, 4], strides = [1, 1]} : vector<8x16xf32> to vector<8x4xf32>
    %49 = vector.extract_strided_slice %41 {offsets = [0, 8], sizes = [8, 8], strides = [1, 1]} : vector<8x16xf32> to vector<8x8xf32>
    %50 = tpu.concatenate %47, %48, %49 in 1 : vector<8x4xf32>, vector<8x4xf32>, vector<8x8xf32> -> vector<8x16xf32>
    %51 = arith.mulf %40, %32 : vector<8x16xf32>
    %52 = arith.mulf %46, %33 : vector<8x16xf32>
    %53 = arith.addf %51, %52 : vector<8x16xf32>
    %54 = arith.mulf %41, %32 : vector<8x16xf32>
    %55 = arith.mulf %50, %33 : vector<8x16xf32>
    %56 = arith.addf %54, %55 : vector<8x16xf32>
    %57 = arith.truncf %53 : vector<8x16xf32> to vector<8x16xbf16>
    %58 = arith.truncf %56 : vector<8x16xf32> to vector<8x16xbf16>
    %cst_22 = arith.constant dense<0.000000e+00> : vector<8x8xf32>
    %59 = tpu.matmul %57, %58, %cst_22 {dimension_numbers = #tpu.dot_dimension_numbers<[1], [1], [0], [0], [0, 0, 1, 0], [], []>} : vector<8x16xbf16>, vector<8x16xbf16>, vector<8x8xf32> -> vector<8x8xf32>
    %60 = arith.addf %59, %39 : vector<8x8xf32>
    %cst_23 = arith.constant dense<0xFF800000> : vector<8xf32>
    %61 = vector.multi_reduction <maximumf>, %60, %cst_23 [1] : vector<8x8xf32> to vector<8xf32>
    %62 = vector.shape_cast %61 : vector<8xf32> to vector<8x1xf32>
    %63 = vector.broadcast %62 : vector<8x1xf32> to vector<8x8xf32>
    %64 = arith.subf %60, %63 : vector<8x8xf32>
    %65 = math.exp %64 : vector<8x8xf32>
    %cst_24 = arith.constant dense<0.000000e+00> : vector<8xf32>
    %66 = vector.multi_reduction <add>, %65, %cst_24 [1] : vector<8x8xf32> to vector<8xf32>
    %67 = vector.shape_cast %66 : vector<8xf32> to vector<8x1xf32>
    %68 = arith.truncf %65 : vector<8x8xf32> to vector<8x8xbf16>
    %69 = arith.truncf %42 : vector<8x16xf32> to vector<8x16xbf16>
    %cst_25 = arith.constant dense<0.000000e+00> : vector<8x16xf32>
    %70 = tpu.matmul %68, %69, %cst_25 {dimension_numbers = #tpu.dot_dimension_numbers<[1], [0], [0], [1], [0, 0, 1, 1], [], []>} : vector<8x8xbf16>, vector<8x16xbf16>, vector<8x16xf32> -> vector<8x16xf32>
    %71 = tpu.reciprocal %67 {approx = true} : vector<8x1xf32> -> vector<8x1xf32>
    %72 = vector.broadcast %71 : vector<8x1xf32> to vector<8x16xf32>
    %73 = arith.mulf %70, %72 : vector<8x16xf32>
    %c0_26 = arith.constant 0 : index
    %c0_27 = arith.constant 0 : index
    %74 = vector.load %arg16[%c0_26, %c0_27] : memref<8x64xf32, #tpu.memory_space<vmem>>, vector<8x16xf32>
    tpu.vector_store %arg16[%c0_26, %c0_27], %73 {strides = array<i32>} : memref<8x64xf32, #tpu.memory_space<vmem>>, vector<8x16xf32>,
    %75 = vector.extract_strided_slice %31 {offsets = [0, 16], sizes = [8, 16], strides = [1, 1]} : vector<8x192xf32> to vector<8x16xf32>
    %76 = vector.extract_strided_slice %31 {offsets = [0, 80], sizes = [8, 16], strides = [1, 1]} : vector<8x192xf32> to vector<8x16xf32>
    %77 = vector.extract_strided_slice %31 {offsets = [0, 144], sizes = [8, 16], strides = [1, 1]} : vector<8x192xf32> to vector<8x16xf32>
    %78 = vector.extract_strided_slice %75 {offsets = [0, 4], sizes = [8, 4], strides = [1, 1]} : vector<8x16xf32> to vector<8x4xf32>
    %79 = vector.extract_strided_slice %75 {offsets = [0, 0], sizes = [8, 4], strides = [1, 1]} : vector<8x16xf32> to vector<8x4xf32>
    %80 = vector.extract_strided_slice %75 {offsets = [0, 8], sizes = [8, 8], strides = [1, 1]} : vector<8x16xf32> to vector<8x8xf32>
    %81 = tpu.concatenate %78, %79, %80 in 1 : vector<8x4xf32>, vector<8x4xf32>, vector<8x8xf32> -> vector<8x16xf32>
    %82 = vector.extract_strided_slice %76 {offsets = [0, 4], sizes = [8, 4], strides = [1, 1]} : vector<8x16xf32> to vector<8x4xf32>
    %83 = vector.extract_strided_slice %76 {offsets = [0, 0], sizes = [8, 4], strides = [1, 1]} : vector<8x16xf32> to vector<8x4xf32>
    %84 = vector.extract_strided_slice %76 {offsets = [0, 8], sizes = [8, 8], strides = [1, 1]} : vector<8x16xf32> to vector<8x8xf32>
    %85 = tpu.concatenate %82, %83, %84 in 1 : vector<8x4xf32>, vector<8x4xf32>, vector<8x8xf32> -> vector<8x16xf32>
    %86 = arith.mulf %75, %32 : vector<8x16xf32>
    %87 = arith.mulf %81, %33 : vector<8x16xf32>
    %88 = arith.addf %86, %87 : vector<8x16xf32>
    %89 = arith.mulf %76, %32 : vector<8x16xf32>
    %90 = arith.mulf %85, %33 : vector<8x16xf32>
    %91 = arith.addf %89, %90 : vector<8x16xf32>
    %92 = arith.truncf %88 : vector<8x16xf32> to vector<8x16xbf16>
    %93 = arith.truncf %91 : vector<8x16xf32> to vector<8x16xbf16>
    %cst_28 = arith.constant dense<0.000000e+00> : vector<8x8xf32>
    %94 = tpu.matmul %92, %93, %cst_28 {dimension_numbers = #tpu.dot_dimension_numbers<[1], [1], [0], [0], [0, 0, 1, 0], [], []>} : vector<8x16xbf16>, vector<8x16xbf16>, vector<8x8xf32> -> vector<8x8xf32>
    %95 = arith.addf %94, %39 : vector<8x8xf32>
    %cst_29 = arith.constant dense<0xFF800000> : vector<8xf32>
    %96 = vector.multi_reduction <maximumf>, %95, %cst_29 [1] : vector<8x8xf32> to vector<8xf32>
    %97 = vector.shape_cast %96 : vector<8xf32> to vector<8x1xf32>
    %98 = vector.broadcast %97 : vector<8x1xf32> to vector<8x8xf32>
    %99 = arith.subf %95, %98 : vector<8x8xf32>
    %100 = math.exp %99 : vector<8x8xf32>
    %cst_30 = arith.constant dense<0.000000e+00> : vector<8xf32>
    %101 = vector.multi_reduction <add>, %100, %cst_30 [1] : vector<8x8xf32> to vector<8xf32>
    %102 = vector.shape_cast %101 : vector<8xf32> to vector<8x1xf32>
    %103 = arith.truncf %100 : vector<8x8xf32> to vector<8x8xbf16>
    %104 = arith.truncf %77 : vector<8x16xf32> to vector<8x16xbf16>
    %cst_31 = arith.constant dense<0.000000e+00> : vector<8x16xf32>
    %105 = tpu.matmul %103, %104, %cst_31 {dimension_numbers = #tpu.dot_dimension_numbers<[1], [0], [0], [1], [0, 0, 1, 1], [], []>} : vector<8x8xbf16>, vector<8x16xbf16>, vector<8x16xf32> -> vector<8x16xf32>
    %106 = tpu.reciprocal %102 {approx = true} : vector<8x1xf32> -> vector<8x1xf32>
    %107 = vector.broadcast %106 : vector<8x1xf32> to vector<8x16xf32>
    %108 = arith.mulf %105, %107 : vector<8x16xf32>
    %c0_32 = arith.constant 0 : index
    %c16 = arith.constant 16 : index
    %109 = vector.load %arg16[%c0_32, %c16] : memref<8x64xf32, #tpu.memory_space<vmem>>, vector<8x16xf32>
    tpu.vector_store %arg16[%c0_32, %c16], %108 {strides = array<i32>} : memref<8x64xf32, #tpu.memory_space<vmem>>, vector<8x16xf32>,
    %110 = vector.extract_strided_slice %31 {offsets = [0, 32], sizes = [8, 16], strides = [1, 1]} : vector<8x192xf32> to vector<8x16xf32>
    %111 = vector.extract_strided_slice %31 {offsets = [0, 96], sizes = [8, 16], strides = [1, 1]} : vector<8x192xf32> to vector<8x16xf32>
    %112 = vector.extract_strided_slice %31 {offsets = [0, 160], sizes = [8, 16], strides = [1, 1]} : vector<8x192xf32> to vector<8x16xf32>
    %113 = vector.extract_strided_slice %110 {offsets = [0, 4], sizes = [8, 4], strides = [1, 1]} : vector<8x16xf32> to vector<8x4xf32>
    %114 = vector.extract_strided_slice %110 {offsets = [0, 0], sizes = [8, 4], strides = [1, 1]} : vector<8x16xf32> to vector<8x4xf32>
    %115 = vector.extract_strided_slice %110 {offsets = [0, 8], sizes = [8, 8], strides = [1, 1]} : vector<8x16xf32> to vector<8x8xf32>
    %116 = tpu.concatenate %113, %114, %115 in 1 : vector<8x4xf32>, vector<8x4xf32>, vector<8x8xf32> -> vector<8x16xf32>
    %117 = vector.extract_strided_slice %111 {offsets = [0, 4], sizes = [8, 4], strides = [1, 1]} : vector<8x16xf32> to vector<8x4xf32>
    %118 = vector.extract_strided_slice %111 {offsets = [0, 0], sizes = [8, 4], strides = [1, 1]} : vector<8x16xf32> to vector<8x4xf32>
    %119 = vector.extract_strided_slice %111 {offsets = [0, 8], sizes = [8, 8], strides = [1, 1]} : vector<8x16xf32> to vector<8x8xf32>
    %120 = tpu.concatenate %117, %118, %119 in 1 : vector<8x4xf32>, vector<8x4xf32>, vector<8x8xf32> -> vector<8x16xf32>
    %121 = arith.mulf %110, %32 : vector<8x16xf32>
    %122 = arith.mulf %116, %33 : vector<8x16xf32>
    %123 = arith.addf %121, %122 : vector<8x16xf32>
    %124 = arith.mulf %111, %32 : vector<8x16xf32>
    %125 = arith.mulf %120, %33 : vector<8x16xf32>
    %126 = arith.addf %124, %125 : vector<8x16xf32>
    %127 = arith.truncf %123 : vector<8x16xf32> to vector<8x16xbf16>
    %128 = arith.truncf %126 : vector<8x16xf32> to vector<8x16xbf16>
    %cst_33 = arith.constant dense<0.000000e+00> : vector<8x8xf32>
    %129 = tpu.matmul %127, %128, %cst_33 {dimension_numbers = #tpu.dot_dimension_numbers<[1], [1], [0], [0], [0, 0, 1, 0], [], []>} : vector<8x16xbf16>, vector<8x16xbf16>, vector<8x8xf32> -> vector<8x8xf32>
    %130 = arith.addf %129, %39 : vector<8x8xf32>
    %cst_34 = arith.constant dense<0xFF800000> : vector<8xf32>
    %131 = vector.multi_reduction <maximumf>, %130, %cst_34 [1] : vector<8x8xf32> to vector<8xf32>
    %132 = vector.shape_cast %131 : vector<8xf32> to vector<8x1xf32>
    %133 = vector.broadcast %132 : vector<8x1xf32> to vector<8x8xf32>
    %134 = arith.subf %130, %133 : vector<8x8xf32>
    %135 = math.exp %134 : vector<8x8xf32>
    %cst_35 = arith.constant dense<0.000000e+00> : vector<8xf32>
    %136 = vector.multi_reduction <add>, %135, %cst_35 [1] : vector<8x8xf32> to vector<8xf32>
    %137 = vector.shape_cast %136 : vector<8xf32> to vector<8x1xf32>
    %138 = arith.truncf %135 : vector<8x8xf32> to vector<8x8xbf16>
    %139 = arith.truncf %112 : vector<8x16xf32> to vector<8x16xbf16>
    %cst_36 = arith.constant dense<0.000000e+00> : vector<8x16xf32>
    %140 = tpu.matmul %138, %139, %cst_36 {dimension_numbers = #tpu.dot_dimension_numbers<[1], [0], [0], [1], [0, 0, 1, 1], [], []>} : vector<8x8xbf16>, vector<8x16xbf16>, vector<8x16xf32> -> vector<8x16xf32>
    %141 = tpu.reciprocal %137 {approx = true} : vector<8x1xf32> -> vector<8x1xf32>
    %142 = vector.broadcast %141 : vector<8x1xf32> to vector<8x16xf32>
    %143 = arith.mulf %140, %142 : vector<8x16xf32>
    %c0_37 = arith.constant 0 : index
    %c32 = arith.constant 32 : index
    %144 = vector.load %arg16[%c0_37, %c32] : memref<8x64xf32, #tpu.memory_space<vmem>>, vector<8x16xf32>
    tpu.vector_store %arg16[%c0_37, %c32], %143 {strides = array<i32>} : memref<8x64xf32, #tpu.memory_space<vmem>>, vector<8x16xf32>,
    %145 = vector.extract_strided_slice %31 {offsets = [0, 48], sizes = [8, 16], strides = [1, 1]} : vector<8x192xf32> to vector<8x16xf32>
    %146 = vector.extract_strided_slice %31 {offsets = [0, 112], sizes = [8, 16], strides = [1, 1]} : vector<8x192xf32> to vector<8x16xf32>
    %147 = vector.extract_strided_slice %31 {offsets = [0, 176], sizes = [8, 16], strides = [1, 1]} : vector<8x192xf32> to vector<8x16xf32>
    %148 = vector.extract_strided_slice %145 {offsets = [0, 4], sizes = [8, 4], strides = [1, 1]} : vector<8x16xf32> to vector<8x4xf32>
    %149 = vector.extract_strided_slice %145 {offsets = [0, 0], sizes = [8, 4], strides = [1, 1]} : vector<8x16xf32> to vector<8x4xf32>
    %150 = vector.extract_strided_slice %145 {offsets = [0, 8], sizes = [8, 8], strides = [1, 1]} : vector<8x16xf32> to vector<8x8xf32>
    %151 = tpu.concatenate %148, %149, %150 in 1 : vector<8x4xf32>, vector<8x4xf32>, vector<8x8xf32> -> vector<8x16xf32>
    %152 = vector.extract_strided_slice %146 {offsets = [0, 4], sizes = [8, 4], strides = [1, 1]} : vector<8x16xf32> to vector<8x4xf32>
    %153 = vector.extract_strided_slice %146 {offsets = [0, 0], sizes = [8, 4], strides = [1, 1]} : vector<8x16xf32> to vector<8x4xf32>
    %154 = vector.extract_strided_slice %146 {offsets = [0, 8], sizes = [8, 8], strides = [1, 1]} : vector<8x16xf32> to vector<8x8xf32>
    %155 = tpu.concatenate %152, %153, %154 in 1 : vector<8x4xf32>, vector<8x4xf32>, vector<8x8xf32> -> vector<8x16xf32>
    %156 = arith.mulf %145, %32 : vector<8x16xf32>
    %157 = arith.mulf %151, %33 : vector<8x16xf32>
    %158 = arith.addf %156, %157 : vector<8x16xf32>
    %159 = arith.mulf %146, %32 : vector<8x16xf32>
    %160 = arith.mulf %155, %33 : vector<8x16xf32>
    %161 = arith.addf %159, %160 : vector<8x16xf32>
    %162 = arith.truncf %158 : vector<8x16xf32> to vector<8x16xbf16>
    %163 = arith.truncf %161 : vector<8x16xf32> to vector<8x16xbf16>
    %cst_38 = arith.constant dense<0.000000e+00> : vector<8x8xf32>
    %164 = tpu.matmul %162, %163, %cst_38 {dimension_numbers = #tpu.dot_dimension_numbers<[1], [1], [0], [0], [0, 0, 1, 0], [], []>} : vector<8x16xbf16>, vector<8x16xbf16>, vector<8x8xf32> -> vector<8x8xf32>
    %165 = arith.addf %164, %39 : vector<8x8xf32>
    %cst_39 = arith.constant dense<0xFF800000> : vector<8xf32>
    %166 = vector.multi_reduction <maximumf>, %165, %cst_39 [1] : vector<8x8xf32> to vector<8xf32>
    %167 = vector.shape_cast %166 : vector<8xf32> to vector<8x1xf32>
    %168 = vector.broadcast %167 : vector<8x1xf32> to vector<8x8xf32>
    %169 = arith.subf %165, %168 : vector<8x8xf32>
    %170 = math.exp %169 : vector<8x8xf32>
    %cst_40 = arith.constant dense<0.000000e+00> : vector<8xf32>
    %171 = vector.multi_reduction <add>, %170, %cst_40 [1] : vector<8x8xf32> to vector<8xf32>
    %172 = vector.shape_cast %171 : vector<8xf32> to vector<8x1xf32>
    %173 = arith.truncf %170 : vector<8x8xf32> to vector<8x8xbf16>
    %174 = arith.truncf %147 : vector<8x16xf32> to vector<8x16xbf16>
    %cst_41 = arith.constant dense<0.000000e+00> : vector<8x16xf32>
    %175 = tpu.matmul %173, %174, %cst_41 {dimension_numbers = #tpu.dot_dimension_numbers<[1], [0], [0], [1], [0, 0, 1, 1], [], []>} : vector<8x8xbf16>, vector<8x16xbf16>, vector<8x16xf32> -> vector<8x16xf32>
    %176 = tpu.reciprocal %172 {approx = true} : vector<8x1xf32> -> vector<8x1xf32>
    %177 = vector.broadcast %176 : vector<8x1xf32> to vector<8x16xf32>
    %178 = arith.mulf %175, %177 : vector<8x16xf32>
    %c0_42 = arith.constant 0 : index
    %c48 = arith.constant 48 : index
    %179 = vector.load %arg16[%c0_42, %c48] : memref<8x64xf32, #tpu.memory_space<vmem>>, vector<8x16xf32>
    tpu.vector_store %arg16[%c0_42, %c48], %178 {strides = array<i32>} : memref<8x64xf32, #tpu.memory_space<vmem>>, vector<8x16xf32>,
    %c0_43 = arith.constant 0 : index
    %c0_44 = arith.constant 0 : index
    %180 = vector.load %arg16[%c0_43, %c0_44] : memref<8x64xf32, #tpu.memory_space<vmem>>, vector<8x64xf32>
    %181 = arith.truncf %180 : vector<8x64xf32> to vector<8x64xbf16>
    %c0_45 = arith.constant 0 : index
    %c0_46 = arith.constant 0 : index
    %c0_47 = arith.constant 0 : index
    %182 = vector.load %arg7[%c0_45, %c0_46, %c0_47] : memref<1x64x64xbf16, #tpu.memory_space<vmem>>, vector<1x64x64xbf16>
    %183 = vector.shape_cast %182 : vector<1x64x64xbf16> to vector<64x64xbf16>
    %cst_48 = arith.constant dense<0.000000e+00> : vector<8x64xf32>
    %184 = tpu.matmul %181, %183, %cst_48 {dimension_numbers = #tpu.dot_dimension_numbers<[1], [0], [0], [1], [0, 0, 1, 1], [], []>} : vector<8x64xbf16>, vector<64x64xbf16>, vector<8x64xf32> -> vector<8x64xf32>
    %c0_49 = arith.constant 0 : index
    %c0_50 = arith.constant 0 : index
    %c0_51 = arith.constant 0 : index
    %185 = vector.load %arg8[%c0_49, %c0_50, %c0_51] : memref<1x64x256xbf16, #tpu.memory_space<vmem>>, vector<1x64x256xbf16>
    %186 = vector.shape_cast %185 : vector<1x64x256xbf16> to vector<64x256xbf16>
    %cst_52 = arith.constant dense<0.000000e+00> : vector<8x256xf32>
    %187 = tpu.matmul %28, %186, %cst_52 {dimension_numbers = #tpu.dot_dimension_numbers<[1], [0], [0], [1], [0, 0, 1, 1], [], []>} : vector<8x64xbf16>, vector<64x256xbf16>, vector<8x256xf32> -> vector<8x256xf32>
    %c0_53 = arith.constant 0 : index
    %c0_54 = arith.constant 0 : index
    %c0_55 = arith.constant 0 : index
    %188 = vector.load %arg9[%c0_53, %c0_54, %c0_55] : memref<1x1x256xf32, #tpu.memory_space<vmem>>, vector<1x1x256xf32>
    %189 = vector.shape_cast %188 : vector<1x1x256xf32> to vector<1x256xf32>
    %190 = vector.broadcast %189 : vector<1x256xf32> to vector<8x256xf32>
    %191 = arith.addf %187, %190 : vector<8x256xf32>
    %cst_56 = arith.constant 5.000000e-01 : f32
    %192 = vector.broadcast %cst_56 : f32 to vector<8x256xf32>
    %193 = arith.mulf %192, %191 : vector<8x256xf32>
    %cst_57 = arith.constant 4.471500e-02 : f32
    %194 = vector.broadcast %cst_57 : f32 to vector<8x256xf32>
    %195 = arith.mulf %194, %191 : vector<8x256xf32>
    %196 = arith.mulf %195, %191 : vector<8x256xf32>
    %197 = arith.mulf %196, %191 : vector<8x256xf32>
    %198 = arith.addf %191, %197 : vector<8x256xf32>
    %cst_58 = arith.constant 0.797884583 : f32
    %199 = vector.broadcast %cst_58 : f32 to vector<8x256xf32>
    %200 = arith.mulf %199, %198 : vector<8x256xf32>
    %201 = math.tanh %200 : vector<8x256xf32>
    %cst_59 = arith.constant 1.000000e+00 : f32
    %202 = vector.broadcast %cst_59 : f32 to vector<8x256xf32>
    %203 = arith.addf %202, %201 : vector<8x256xf32>
    %204 = arith.mulf %193, %203 : vector<8x256xf32>
    %205 = arith.truncf %204 : vector<8x256xf32> to vector<8x256xbf16>
    %c0_60 = arith.constant 0 : index
    %c0_61 = arith.constant 0 : index
    %c0_62 = arith.constant 0 : index
    %206 = vector.load %arg10[%c0_60, %c0_61, %c0_62] : memref<1x256x64xbf16, #tpu.memory_space<vmem>>, vector<1x256x64xbf16>
    %207 = vector.shape_cast %206 : vector<1x256x64xbf16> to vector<256x64xbf16>
    %cst_63 = arith.constant dense<0.000000e+00> : vector<8x64xf32>
    %208 = tpu.matmul %205, %207, %cst_63 {dimension_numbers = #tpu.dot_dimension_numbers<[1], [0], [0], [1], [0, 0, 1, 1], [], []>} : vector<8x256xbf16>, vector<256x64xbf16>, vector<8x64xf32> -> vector<8x64xf32>
    %c0_64 = arith.constant 0 : index
    %c0_65 = arith.constant 0 : index
    %c0_66 = arith.constant 0 : index
    %209 = vector.load %arg11[%c0_64, %c0_65, %c0_66] : memref<1x1x64xf32, #tpu.memory_space<vmem>>, vector<1x1x64xf32>
    %210 = vector.shape_cast %209 : vector<1x1x64xf32> to vector<1x64xf32>
    %211 = vector.broadcast %210 : vector<1x64xf32> to vector<8x64xf32>
    %212 = arith.addf %208, %211 : vector<8x64xf32>
    %213 = arith.addf %184, %212 : vector<8x64xf32>
    %214 = arith.addf %213, %3 : vector<8x64xf32>
    %c0_67 = arith.constant 0 : index
    %c0_68 = arith.constant 0 : index
    %215 = vector.load %arg15[%c0_67, %c0_68] : memref<8x64xf32, #tpu.memory_space<vmem>>, vector<8x64xf32>
    tpu.vector_store %arg15[%c0_67, %c0_68], %214 {strides = array<i32>} : memref<8x64xf32, #tpu.memory_space<vmem>>, vector<8x64xf32>,
    %c1_i32 = arith.constant 1 : i32
    %216 = arith.cmpi eq, %arg0, %c1_i32 : i32
    %217 = arith.extui %216 : i1 to i32
    %c0_i32_69 = arith.constant 0 : i32
    %218 = arith.cmpi ne, %217, %c0_i32_69 : i32
    scf.if %218 {
      %c0_70 = arith.constant 0 : index
      %c0_71 = arith.constant 0 : index
      %219 = vector.load %arg12[%c0_70, %c0_71] : memref<1x64xf32, #tpu.memory_space<vmem>>, vector<1x64xf32>
      %c0_72 = arith.constant 0 : index
      %c0_73 = arith.constant 0 : index
      %220 = vector.load %arg13[%c0_72, %c0_73] : memref<1x64xf32, #tpu.memory_space<vmem>>, vector<1x64xf32>
      %cst_74 = arith.constant dense<0.000000e+00> : vector<8xf32>
      %221 = vector.multi_reduction <add>, %214, %cst_74 [1] : vector<8x64xf32> to vector<8xf32>
      %222 = vector.shape_cast %221 : vector<8xf32> to vector<8x1xf32>
      %cst_75 = arith.constant 6.400000e+01 : f32
      %223 = vector.broadcast %cst_75 : f32 to vector<8x1xf32>
      %224 = arith.divf %222, %223 : vector<8x1xf32>
      %225 = vector.broadcast %224 : vector<8x1xf32> to vector<8x64xf32>
      %226 = arith.subf %214, %225 : vector<8x64xf32>
      %227 = arith.mulf %226, %226 : vector<8x64xf32>
      %cst_76 = arith.constant dense<0.000000e+00> : vector<8xf32>
      %228 = vector.multi_reduction <add>, %227, %cst_76 [1] : vector<8x64xf32> to vector<8xf32>
      %229 = vector.shape_cast %228 : vector<8xf32> to vector<8x1xf32>
      %cst_77 = arith.constant 6.400000e+01 : f32
      %230 = vector.broadcast %cst_77 : f32 to vector<8x1xf32>
      %231 = arith.divf %229, %230 : vector<8x1xf32>
      %cst_78 = arith.constant 9.99999974E-6 : f32
      %232 = vector.broadcast %cst_78 : f32 to vector<8x1xf32>
      %233 = arith.addf %231, %232 : vector<8x1xf32>
      %234 = math.rsqrt %233 : vector<8x1xf32>
      %235 = vector.broadcast %234 : vector<8x1xf32> to vector<8x64xf32>
      %236 = arith.mulf %226, %235 : vector<8x64xf32>
      %237 = vector.broadcast %219 : vector<1x64xf32> to vector<8x64xf32>
      %238 = arith.mulf %236, %237 : vector<8x64xf32>
      %239 = vector.broadcast %220 : vector<1x64xf32> to vector<8x64xf32>
      %240 = arith.addf %238, %239 : vector<8x64xf32>
      %c0_79 = arith.constant 0 : index
      %c0_80 = arith.constant 0 : index
      %241 = vector.load %arg14[%c0_79, %c0_80] : memref<8x64xf32, #tpu.memory_space<vmem>>, vector<8x64xf32>
      tpu.vector_store %arg14[%c0_79, %c0_80], %240 {strides = array<i32>} : memref<8x64xf32, #tpu.memory_space<vmem>>, vector<8x64xf32>,
    } else {
    }
    return
  }
  func.func @transform_0(%arg0: i32) -> (i32, i32) {
    %c0_i32 = arith.constant 0 : i32
    %c0_i32_0 = arith.constant 0 : i32
    %c0_i32_1 = arith.constant 0 : i32
    return %c0_i32, %c0_i32_0 : i32, i32
  }
  func.func @transform_1(%arg0: i32) -> (i32, i32) {
    %c0_i32 = arith.constant 0 : i32
    %c0_i32_0 = arith.constant 0 : i32
    %c0_i32_1 = arith.constant 0 : i32
    return %c0_i32, %c0_i32_0 : i32, i32
  }
  func.func @transform_2(%arg0: i32) -> (i32, i32) {
    %c0_i32 = arith.constant 0 : i32
    %c0_i32_0 = arith.constant 0 : i32
    %c0_i32_1 = arith.constant 0 : i32
    return %c0_i32, %c0_i32_0 : i32, i32
  }
  func.func @transform_3(%arg0: i32) -> (i32, i32, i32) {
    %c0_i32 = arith.constant 0 : i32
    %c0_i32_0 = arith.constant 0 : i32
    %c0_i32_1 = arith.constant 0 : i32
    return %arg0, %c0_i32, %c0_i32_0 : i32, i32, i32
  }
  func.func @transform_4(%arg0: i32) -> (i32, i32, i32) {
    %c0_i32 = arith.constant 0 : i32
    %c0_i32_0 = arith.constant 0 : i32
    %c0_i32_1 = arith.constant 0 : i32
    return %arg0, %c0_i32, %c0_i32_0 : i32, i32, i32
  }
  func.func @transform_5(%arg0: i32) -> (i32, i32, i32) {
    %c0_i32 = arith.constant 0 : i32
    %c0_i32_0 = arith.constant 0 : i32
    %c0_i32_1 = arith.constant 0 : i32
    return %arg0, %c0_i32, %c0_i32_0 : i32, i32, i32
  }
  func.func @transform_6(%arg0: i32) -> (i32, i32, i32) {
    %c0_i32 = arith.constant 0 : i32
    %c0_i32_0 = arith.constant 0 : i32
    %c0_i32_1 = arith.constant 0 : i32
    return %arg0, %c0_i32, %c0_i32_0 : i32, i32, i32
  }
  func.func @transform_7(%arg0: i32) -> (i32, i32, i32) {
    %c0_i32 = arith.constant 0 : i32
    %c0_i32_0 = arith.constant 0 : i32
    %c0_i32_1 = arith.constant 0 : i32
    return %arg0, %c0_i32, %c0_i32_0 : i32, i32, i32
  }
  func.func @transform_8(%arg0: i32) -> (i32, i32, i32) {
    %c0_i32 = arith.constant 0 : i32
    %c0_i32_0 = arith.constant 0 : i32
    %c0_i32_1 = arith.constant 0 : i32
    return %arg0, %c0_i32, %c0_i32_0 : i32, i32, i32
  }
  func.func @transform_9(%arg0: i32) -> (i32, i32, i32) {
    %c0_i32 = arith.constant 0 : i32
    %c0_i32_0 = arith.constant 0 : i32
    %c0_i32_1 = arith.constant 0 : i32
    return %arg0, %c0_i32, %c0_i32_0 : i32, i32, i32
  }
  func.func @transform_10(%arg0: i32) -> (i32, i32, i32) {
    %c0_i32 = arith.constant 0 : i32
    %c0_i32_0 = arith.constant 0 : i32
    %c0_i32_1 = arith.constant 0 : i32
    return %arg0, %c0_i32, %c0_i32_0 : i32, i32, i32
  }
  func.func @transform_11(%arg0: i32) -> (i32, i32) {
    %c0_i32 = arith.constant 0 : i32
    %c0_i32_0 = arith.constant 0 : i32
    %c0_i32_1 = arith.constant 0 : i32
    return %c0_i32, %c0_i32_0 : i32, i32
  }
  func.func @transform_12(%arg0: i32) -> (i32, i32) {
    %c0_i32 = arith.constant 0 : i32
    %c0_i32_0 = arith.constant 0 : i32
    %c0_i32_1 = arith.constant 0 : i32
    return %c0_i32, %c0_i32_0 : i32, i32
  }
  func.func @transform_13(%arg0: i32) -> (i32, i32) {
    %c0_i32 = arith.constant 0 : i32
    %c0_i32_0 = arith.constant 0 : i32
    %c0_i32_1 = arith.constant 0 : i32
    return %c0_i32, %c0_i32_0 : i32, i32
  }
}

</mosaic_0001>

<llo_original>
// kernel: gptj_model.1
$region0: #{gptj_model.1}
  #allocation0 [shape = 'u32[]', space=smem, size = 0x4, offset = 0x4, fixed_abs, tag = 'smem constant byte address 0x4 - core index']
  #allocation1 [shape = 'u32[144,128]{1,0:T(1,128)}', space=vmem, size = 0x12000, scoped, tag = 'internal scratch']
  #allocation2 [shape = 'f32[8,64]{1,0:T(8,128)}', space=vmem, size = 0x1000, scoped, tag = 'scratch operand']
  #allocation3 [shape = 'f32[8,64]{1,0:T(8,128)}', space=vmem, size = 0x1000, scoped, tag = 'scratch operand']
  %s0 = inlined_call_operand.vmem [shape: f32[8,64], index: 0, kind: input, shape index: {}]
  %s1 = inlined_call_operand.vmem [shape: f32[8,16], index: 1, kind: input, shape index: {}]
  %s2 = inlined_call_operand.vmem [shape: f32[8,16], index: 2, kind: input, shape index: {}]
  %s3 = inlined_call_operand.vmem [shape: f32[2,1,64], index: 3, kind: input, shape index: {}]
  %s4 = inlined_call_operand.vmem [shape: f32[2,1,64], index: 4, kind: input, shape index: {}]
  %s5 = inlined_call_operand.vmem [shape: bf16[2,64,192], index: 5, kind: input, shape index: {}]
  %s6 = inlined_call_operand.vmem [shape: bf16[2,64,64], index: 6, kind: input, shape index: {}]
  %s7 = inlined_call_operand.vmem [shape: bf16[2,64,256], index: 7, kind: input, shape index: {}]
  %s8 = inlined_call_operand.vmem [shape: f32[2,1,256], index: 8, kind: input, shape index: {}]
  %s9 = inlined_call_operand.vmem [shape: bf16[2,256,64], index: 9, kind: input, shape index: {}]
  %s10 = inlined_call_operand.vmem [shape: f32[2,1,64], index: 10, kind: input, shape index: {}]
  %s11 = inlined_call_operand.vmem [shape: f32[1,64], index: 11, kind: input, shape index: {}]
  %s12 = inlined_call_operand.vmem [shape: f32[1,64], index: 12, kind: input, shape index: {}]
  %s13 = inlined_call_operand.hbm [shape: f32[8,64], index: 13, kind: output, shape index: {}]
  %s14 = sld [smem:[#allocation0]]
  $region93: #{gptj_model.1} parent=0
    _
  %s16 = ssub.s32 1, %s14
  %s17 = scalar_select 0, %s16, %s14
  $region1: #{gptj_model.1} parent=0
    #allocation4 [shape = 'u8[4096]{0}', space=vmem, size = 0x1000, scoped, tag = 'output window, operand 0, single buffered']
    #allocation5 [shape = 's32[2]{0}', space=sflag, size = 0x8, scoped, tag = 'scoped memory for gptj_model.1']
    %18 = vsyncpa [#allocation5], 0
    loop: start=0, step=1, limit=4
    $region2: #{gptj_model.1} parent=1 // loop_pre_header
      _
    $region3: #{gptj_model.1} parent=1 // loop_header
      %s20 = sphi 0, %s24
      %p21 = scmp.ge.s32.totalorder %s20, 4
      %s28 = sphi 0, %s28
      %s30 = sphi 0, %s28
      %s31 = sphi 0, %s30
      %s45 = sphi 0, %s31
      %s49 = sphi 0, %s49
      %s51 = sphi 0, %s49
      %s52 = sphi 0, %s51
      %s66 = sphi 0, %s52
      %s70 = sphi 0, %s70
      %s72 = sphi 0, %s70
      %s73 = sphi 0, %s72
      %s87 = sphi 0, %s73
      %s93 = sphi 0, %s95
      %s96 = sphi 0, %s93
      %s97 = sphi 0, %s96
      %s113 = sphi 0, %s97
      %s119 = sphi 0, %s121
      %s122 = sphi 0, %s119
      %s123 = sphi 0, %s122
      %s139 = sphi 0, %s123
      %s145 = sphi 0, %s147
      %s148 = sphi 0, %s145
      %s149 = sphi 0, %s148
      %s165 = sphi 0, %s149
      %s171 = sphi 0, %s173
      %s174 = sphi 0, %s171
      %s175 = sphi 0, %s174
      %s191 = sphi 0, %s175
      %s197 = sphi 0, %s199
      %s200 = sphi 0, %s197
      %s201 = sphi 0, %s200
      %s217 = sphi 0, %s201
      %s223 = sphi 0, %s225
      %s226 = sphi 0, %s223
      %s227 = sphi 0, %s226
      %s243 = sphi 0, %s227
      %s249 = sphi 0, %s251
      %s252 = sphi 0, %s249
      %s253 = sphi 0, %s252
      %s269 = sphi 0, %s253
      %s275 = sphi 0, %s277
      %s278 = sphi 0, %s275
      %s279 = sphi 0, %s278
      %s295 = sphi 0, %s279
      %s299 = sphi 0, %s299
      %s301 = sphi 0, %s299
      %s302 = sphi 0, %s301
      %s316 = sphi 0, %s302
      %s320 = sphi 0, %s320
      %s322 = sphi 0, %s320
      %s323 = sphi 0, %s322
      %s337 = sphi 0, %s323
      %s341 = sphi 0, %s341
      %s343 = sphi 0, %s341
      %s344 = sphi 0, %s343
      %s358 = sphi 0, %s344
    $region4: #{gptj_model.1} parent=1 // loop_header_branch
      %23 = sbr.rel (%p21) target = $region8
    $region5: #{gptj_model.1} parent=1 // loop_body
      %s25 = ssub.s32 %s20, 1
      %s26 = ssub.s32 %s20, 2
      %s27 = sadd.s32 %s20, 1
      %s29 = sadd.s32 %s28, 1
      %p32 = scmp.eq.s32.totalorder %s20, 1
      %p33 = scmp.ne.s32.totalorder %s28, %s30
      %p34 = scmp.eq.s32.totalorder %s20, 0
      %p35 = por %p33, %p34
      %p36 = scmp.ne.s32.totalorder %s28, %s30
      %p37 = scmp.eq.s32.totalorder %s25, 1
      %p38 = por %p36, %p37
      %p39 = scmp.ne.s32.totalorder %s30, %s31
      %p40 = scmp.eq.s32.totalorder %s25, 0
      %p41 = por %p39, %p40
      %p42 = scmp.ne.s32.totalorder %s30, %s31
      %p43 = scmp.eq.s32.totalorder %s26, 1
      %p44 = por %p42, %p43
      %p46 = scmp.ne.s32.totalorder %s31, %s45
      %p47 = scmp.eq.s32.totalorder %s26, 0
      %p48 = por %p46, %p47
      %s50 = sadd.s32 %s49, 1
      %p53 = scmp.eq.s32.totalorder %s20, 1
      %p54 = scmp.ne.s32.totalorder %s49, %s51
      %p55 = scmp.eq.s32.totalorder %s20, 0
      %p56 = por %p54, %p55
      %p57 = scmp.ne.s32.totalorder %s49, %s51
      %p58 = scmp.eq.s32.totalorder %s25, 1
      %p59 = por %p57, %p58
      %p60 = scmp.ne.s32.totalorder %s51, %s52
      %p61 = scmp.eq.s32.totalorder %s25, 0
      %p62 = por %p60, %p61
      %p63 = scmp.ne.s32.totalorder %s51, %s52
      %p64 = scmp.eq.s32.totalorder %s26, 1
      %p65 = por %p63, %p64
      %p67 = scmp.ne.s32.totalorder %s52, %s66
      %p68 = scmp.eq.s32.totalorder %s26, 0
      %p69 = por %p67, %p68
      %s71 = sadd.s32 %s70, 1
      %p74 = scmp.eq.s32.totalorder %s20, 1
      %p75 = scmp.ne.s32.totalorder %s70, %s72
      %p76 = scmp.eq.s32.totalorder %s20, 0
      %p77 = por %p75, %p76
      %p78 = scmp.ne.s32.totalorder %s70, %s72
      %p79 = scmp.eq.s32.totalorder %s25, 1
      %p80 = por %p78, %p79
      %p81 = scmp.ne.s32.totalorder %s72, %s73
      %p82 = scmp.eq.s32.totalorder %s25, 0
      %p83 = por %p81, %p82
      %p84 = scmp.ne.s32.totalorder %s72, %s73
      %p85 = scmp.eq.s32.totalorder %s26, 1
      %p86 = por %p84, %p85
      %p88 = scmp.ne.s32.totalorder %s73, %s87
      %p89 = scmp.eq.s32.totalorder %s26, 0
      %p90 = por %p88, %p89
      %s91 = ssub.s32 %s20, %s27
      %p92 = scmp.eq.s32.totalorder %s91, 0
      %s94 = sadd.s32 %s93, 1
      %s95 = scalar_select %p92, %s93, %s94
      %p98 = pneg %p92
      %p99 = scmp.eq.s32.totalorder %s20, 1
      %p100 = por %p98, %p99
      %p101 = scmp.ne.s32.totalorder %s93, %s96
      %p102 = scmp.eq.s32.totalorder %s20, 0
      %p103 = por %p101, %p102
      %p104 = scmp.ne.s32.totalorder %s93, %s96
      %p105 = scmp.eq.s32.totalorder %s25, 1
      %p106 = por %p104, %p105
      %p107 = scmp.ne.s32.totalorder %s96, %s97
      %p108 = scmp.eq.s32.totalorder %s25, 0
      %p109 = por %p107, %p108
      %p110 = scmp.ne.s32.totalorder %s96, %s97
      %p111 = scmp.eq.s32.totalorder %s26, 1
      %p112 = por %p110, %p111
      %p114 = scmp.ne.s32.totalorder %s97, %s113
      %p115 = scmp.eq.s32.totalorder %s26, 0
      %p116 = por %p114, %p115
      %s117 = ssub.s32 %s20, %s27
      %p118 = scmp.eq.s32.totalorder %s117, 0
      %s120 = sadd.s32 %s119, 1
      %s121 = scalar_select %p118, %s119, %s120
      %p124 = pneg %p118
      %p125 = scmp.eq.s32.totalorder %s20, 1
      %p126 = por %p124, %p125
      %p127 = scmp.ne.s32.totalorder %s119, %s122
      %p128 = scmp.eq.s32.totalorder %s20, 0
      %p129 = por %p127, %p128
      %p130 = scmp.ne.s32.totalorder %s119, %s122
      %p131 = scmp.eq.s32.totalorder %s25, 1
      %p132 = por %p130, %p131
      %p133 = scmp.ne.s32.totalorder %s122, %s123
      %p134 = scmp.eq.s32.totalorder %s25, 0
      %p135 = por %p133, %p134
      %p136 = scmp.ne.s32.totalorder %s122, %s123
      %p137 = scmp.eq.s32.totalorder %s26, 1
      %p138 = por %p136, %p137
      %p140 = scmp.ne.s32.totalorder %s123, %s139
      %p141 = scmp.eq.s32.totalorder %s26, 0
      %p142 = por %p140, %p141
      %s143 = ssub.s32 %s20, %s27
      %p144 = scmp.eq.s32.totalorder %s143, 0
      %s146 = sadd.s32 %s145, 1
      %s147 = scalar_select %p144, %s145, %s146
      %p150 = pneg %p144
      %p151 = scmp.eq.s32.totalorder %s20, 1
      %p152 = por %p150, %p151
      %p153 = scmp.ne.s32.totalorder %s145, %s148
      %p154 = scmp.eq.s32.totalorder %s20, 0
      %p155 = por %p153, %p154
      %p156 = scmp.ne.s32.totalorder %s145, %s148
      %p157 = scmp.eq.s32.totalorder %s25, 1
      %p158 = por %p156, %p157
      %p159 = scmp.ne.s32.totalorder %s148, %s149
      %p160 = scmp.eq.s32.totalorder %s25, 0
      %p161 = por %p159, %p160
      %p162 = scmp.ne.s32.totalorder %s148, %s149
      %p163 = scmp.eq.s32.totalorder %s26, 1
      %p164 = por %p162, %p163
      %p166 = scmp.ne.s32.totalorder %s149, %s165
      %p167 = scmp.eq.s32.totalorder %s26, 0
      %p168 = por %p166, %p167
      %s169 = ssub.s32 %s20, %s27
      %p170 = scmp.eq.s32.totalorder %s169, 0
      %s172 = sadd.s32 %s171, 1
      %s173 = scalar_select %p170, %s171, %s172
      %p176 = pneg %p170
      %p177 = scmp.eq.s32.totalorder %s20, 1
      %p178 = por %p176, %p177
      %p179 = scmp.ne.s32.totalorder %s171, %s174
      %p180 = scmp.eq.s32.totalorder %s20, 0
      %p181 = por %p179, %p180
      %p182 = scmp.ne.s32.totalorder %s171, %s174
      %p183 = scmp.eq.s32.totalorder %s25, 1
      %p184 = por %p182, %p183
      %p185 = scmp.ne.s32.totalorder %s174, %s175
      %p186 = scmp.eq.s32.totalorder %s25, 0
      %p187 = por %p185, %p186
      %p188 = scmp.ne.s32.totalorder %s174, %s175
      %p189 = scmp.eq.s32.totalorder %s26, 1
      %p190 = por %p188, %p189
      %p192 = scmp.ne.s32.totalorder %s175, %s191
      %p193 = scmp.eq.s32.totalorder %s26, 0
      %p194 = por %p192, %p193
      %s195 = ssub.s32 %s20, %s27
      %p196 = scmp.eq.s32.totalorder %s195, 0
      %s198 = sadd.s32 %s197, 1
      %s199 = scalar_select %p196, %s197, %s198
      %p202 = pneg %p196
      %p203 = scmp.eq.s32.totalorder %s20, 1
      %p204 = por %p202, %p203
      %p205 = scmp.ne.s32.totalorder %s197, %s200
      %p206 = scmp.eq.s32.totalorder %s20, 0
      %p207 = por %p205, %p206
      %p208 = scmp.ne.s32.totalorder %s197, %s200
      %p209 = scmp.eq.s32.totalorder %s25, 1
      %p210 = por %p208, %p209
      %p211 = scmp.ne.s32.totalorder %s200, %s201
      %p212 = scmp.eq.s32.totalorder %s25, 0
      %p213 = por %p211, %p212
      %p214 = scmp.ne.s32.totalorder %s200, %s201
      %p215 = scmp.eq.s32.totalorder %s26, 1
      %p216 = por %p214, %p215
      %p218 = scmp.ne.s32.totalorder %s201, %s217
      %p219 = scmp.eq.s32.totalorder %s26, 0
      %p220 = por %p218, %p219
      %s221 = ssub.s32 %s20, %s27
      %p222 = scmp.eq.s32.totalorder %s221, 0
      %s224 = sadd.s32 %s223, 1
      %s225 = scalar_select %p222, %s223, %s224
      %p228 = pneg %p222
      %p229 = scmp.eq.s32.totalorder %s20, 1
      %p230 = por %p228, %p229
      %p231 = scmp.ne.s32.totalorder %s223, %s226
      %p232 = scmp.eq.s32.totalorder %s20, 0
      %p233 = por %p231, %p232
      %p234 = scmp.ne.s32.totalorder %s223, %s226
      %p235 = scmp.eq.s32.totalorder %s25, 1
      %p236 = por %p234, %p235
      %p237 = scmp.ne.s32.totalorder %s226, %s227
      %p238 = scmp.eq.s32.totalorder %s25, 0
      %p239 = por %p237, %p238
      %p240 = scmp.ne.s32.totalorder %s226, %s227
      %p241 = scmp.eq.s32.totalorder %s26, 1
      %p242 = por %p240, %p241
      %p244 = scmp.ne.s32.totalorder %s227, %s243
      %p245 = scmp.eq.s32.totalorder %s26, 0
      %p246 = por %p244, %p245
      %s247 = ssub.s32 %s20, %s27
      %p248 = scmp.eq.s32.totalorder %s247, 0
      %s250 = sadd.s32 %s249, 1
      %s251 = scalar_select %p248, %s249, %s250
      %p254 = pneg %p248
      %p255 = scmp.eq.s32.totalorder %s20, 1
      %p256 = por %p254, %p255
      %p257 = scmp.ne.s32.totalorder %s249, %s252
      %p258 = scmp.eq.s32.totalorder %s20, 0
      %p259 = por %p257, %p258
      %p260 = scmp.ne.s32.totalorder %s249, %s252
      %p261 = scmp.eq.s32.totalorder %s25, 1
      %p262 = por %p260, %p261
      %p263 = scmp.ne.s32.totalorder %s252, %s253
      %p264 = scmp.eq.s32.totalorder %s25, 0
      %p265 = por %p263, %p264
      %p266 = scmp.ne.s32.totalorder %s252, %s253
      %p267 = scmp.eq.s32.totalorder %s26, 1
      %p268 = por %p266, %p267
      %p270 = scmp.ne.s32.totalorder %s253, %s269
      %p271 = scmp.eq.s32.totalorder %s26, 0
      %p272 = por %p270, %p271
      %s273 = ssub.s32 %s20, %s27
      %p274 = scmp.eq.s32.totalorder %s273, 0
      %s276 = sadd.s32 %s275, 1
      %s277 = scalar_select %p274, %s275, %s276
      %p280 = pneg %p274
      %p281 = scmp.eq.s32.totalorder %s20, 1
      %p282 = por %p280, %p281
      %p283 = scmp.ne.s32.totalorder %s275, %s278
      %p284 = scmp.eq.s32.totalorder %s20, 0
      %p285 = por %p283, %p284
      %p286 = scmp.ne.s32.totalorder %s275, %s278
      %p287 = scmp.eq.s32.totalorder %s25, 1
      %p288 = por %p286, %p287
      %p289 = scmp.ne.s32.totalorder %s278, %s279
      %p290 = scmp.eq.s32.totalorder %s25, 0
      %p291 = por %p289, %p290
      %p292 = scmp.ne.s32.totalorder %s278, %s279
      %p293 = scmp.eq.s32.totalorder %s26, 1
      %p294 = por %p292, %p293
      %p296 = scmp.ne.s32.totalorder %s279, %s295
      %p297 = scmp.eq.s32.totalorder %s26, 0
      %p298 = por %p296, %p297
      %s300 = sadd.s32 %s299, 1
      %p303 = scmp.eq.s32.totalorder %s20, 1
      %p304 = scmp.ne.s32.totalorder %s299, %s301
      %p305 = scmp.eq.s32.totalorder %s20, 0
      %p306 = por %p304, %p305
      %p307 = scmp.ne.s32.totalorder %s299, %s301
      %p308 = scmp.eq.s32.totalorder %s25, 1
      %p309 = por %p307, %p308
      %p310 = scmp.ne.s32.totalorder %s301, %s302
      %p311 = scmp.eq.s32.totalorder %s25, 0
      %p312 = por %p310, %p311
      %p313 = scmp.ne.s32.totalorder %s301, %s302
      %p314 = scmp.eq.s32.totalorder %s26, 1
      %p315 = por %p313, %p314
      %p317 = scmp.ne.s32.totalorder %s302, %s316
      %p318 = scmp.eq.s32.totalorder %s26, 0
      %p319 = por %p317, %p318
      %s321 = sadd.s32 %s320, 1
      %p324 = scmp.eq.s32.totalorder %s20, 1
      %p325 = scmp.ne.s32.totalorder %s320, %s322
      %p326 = scmp.eq.s32.totalorder %s20, 0
      %p327 = por %p325, %p326
      %p328 = scmp.ne.s32.totalorder %s320, %s322
      %p329 = scmp.eq.s32.totalorder %s25, 1
      %p330 = por %p328, %p329
      %p331 = scmp.ne.s32.totalorder %s322, %s323
      %p332 = scmp.eq.s32.totalorder %s25, 0
      %p333 = por %p331, %p332
      %p334 = scmp.ne.s32.totalorder %s322, %s323
      %p335 = scmp.eq.s32.totalorder %s26, 1
      %p336 = por %p334, %p335
      %p338 = scmp.ne.s32.totalorder %s323, %s337
      %p339 = scmp.eq.s32.totalorder %s26, 0
      %p340 = por %p338, %p339
      %s342 = sadd.s32 %s341, 1
      %p345 = scmp.eq.s32.totalorder %s20, 1
      %p346 = scmp.ne.s32.totalorder %s341, %s343
      %p347 = scmp.eq.s32.totalorder %s20, 0
      %p348 = por %p346, %p347
      %p349 = scmp.ne.s32.totalorder %s341, %s343
      %p350 = scmp.eq.s32.totalorder %s25, 1
      %p351 = por %p349, %p350
      %p352 = scmp.ne.s32.totalorder %s343, %s344
      %p353 = scmp.eq.s32.totalorder %s25, 0
      %p354 = por %p352, %p353
      %p355 = scmp.ne.s32.totalorder %s343, %s344
      %p356 = scmp.eq.s32.totalorder %s26, 1
      %p357 = por %p355, %p356
      %p359 = scmp.ne.s32.totalorder %s344, %s358
      %p360 = scmp.eq.s32.totalorder %s26, 0
      %p361 = por %p359, %p360
      %p362 = scmp.le.s32.totalorder 1, %s20
      %p363 = scmp.lt.s32.totalorder %s20, 3
      %p364 = pnand %p362, %p363
      %p365 = pneg %p364
      // Predicated region
      $region9: #{gptj_model.1} parent=5 // pred_check
        _
      $region10: #{gptj_model.1} parent=5 // pred_check_branch
        %367 = sbr.rel (%p364) target = $region12
      $region11: #{gptj_model.1} parent=5 // pred_region
        %s368 = ssub.s32 %s20, 1
        // Predicated region
        $region13: #{gptj_model.1} parent=11 // pred_check
          %p369 = pneg %p41
        $region14: #{gptj_model.1} parent=11 // pred_check_branch
          %371 = sbr.rel (%p369) target = $region16
        $region15: #{gptj_model.1} parent=11 // pred_region
          _
        $region16: #{gptj_model.1} parent=11 // pred_fallthru
          _
        // Predicated region
        $region17: #{gptj_model.1} parent=11 // pred_check
          %p372 = pneg %p62
        $region18: #{gptj_model.1} parent=11 // pred_check_branch
          %374 = sbr.rel (%p372) target = $region20
        $region19: #{gptj_model.1} parent=11 // pred_region
          _
        $region20: #{gptj_model.1} parent=11 // pred_fallthru
          _
        // Predicated region
        $region21: #{gptj_model.1} parent=11 // pred_check
          %p375 = pneg %p83
        $region22: #{gptj_model.1} parent=11 // pred_check_branch
          %377 = sbr.rel (%p375) target = $region24
        $region23: #{gptj_model.1} parent=11 // pred_region
          _
        $region24: #{gptj_model.1} parent=11 // pred_fallthru
          _
        // Predicated region
        $region25: #{gptj_model.1} parent=11 // pred_check
          %p378 = pneg %p312
        $region26: #{gptj_model.1} parent=11 // pred_check_branch
          %380 = sbr.rel (%p378) target = $region28
        $region27: #{gptj_model.1} parent=11 // pred_region
          _
        $region28: #{gptj_model.1} parent=11 // pred_fallthru
          _
        // Predicated region
        $region29: #{gptj_model.1} parent=11 // pred_check
          %p381 = pneg %p333
        $region30: #{gptj_model.1} parent=11 // pred_check_branch
          %383 = sbr.rel (%p381) target = $region32
        $region31: #{gptj_model.1} parent=11 // pred_region
          _
        $region32: #{gptj_model.1} parent=11 // pred_fallthru
          _
      $region12: #{gptj_model.1} parent=5 // pred_fallthru
        _
      %p384 = scmp.lt.s32.totalorder %s20, 2
      // Predicated region
      $region33: #{gptj_model.1} parent=5 // pred_check
        %p385 = pneg %p384
      $region34: #{gptj_model.1} parent=5 // pred_check_branch
        %387 = sbr.rel (%p385) target = $region36
      $region35: #{gptj_model.1} parent=5 // pred_region
        // Predicated region
        $region37: #{gptj_model.1} parent=35 // pred_check
          %p388 = pneg %p103
        $region38: #{gptj_model.1} parent=35 // pred_check_branch
          %390 = sbr.rel (%p388) target = $region40
        $region39: #{gptj_model.1} parent=35 // pred_region
          %p391 = scmp.lt.s32.totalorder %s20, 1
          %s392 = scalar_select %p391, %s20, 1
          %s393 = scalar_lea.vmem %s3, %s392
        $region40: #{gptj_model.1} parent=35 // pred_fallthru
          _
        // Predicated region
        $region41: #{gptj_model.1} parent=35 // pred_check
          %p394 = pneg %p129
        $region42: #{gptj_model.1} parent=35 // pred_check_branch
          %396 = sbr.rel (%p394) target = $region44
        $region43: #{gptj_model.1} parent=35 // pred_region
          %p397 = scmp.lt.s32.totalorder %s20, 1
          %s398 = scalar_select %p397, %s20, 1
          %s399 = scalar_lea.vmem %s4, %s398
        $region44: #{gptj_model.1} parent=35 // pred_fallthru
          _
        // Predicated region
        $region45: #{gptj_model.1} parent=35 // pred_check
          %p400 = pneg %p155
        $region46: #{gptj_model.1} parent=35 // pred_check_branch
          %402 = sbr.rel (%p400) target = $region48
        $region47: #{gptj_model.1} parent=35 // pred_region
          %p403 = scmp.lt.s32.totalorder %s20, 1
          %s404 = scalar_select %p403, %s20, 1
          %s405 = smul.addr %s404, 16
          %s406 = smul.addr %s405, 4
          %s407 = scalar_lea.vmem %s5, %s406
        $region48: #{gptj_model.1} parent=35 // pred_fallthru
          _
        // Predicated region
        $region49: #{gptj_model.1} parent=35 // pred_check
          %p408 = pneg %p181
        $region50: #{gptj_model.1} parent=35 // pred_check_branch
          %410 = sbr.rel (%p408) target = $region52
        $region51: #{gptj_model.1} parent=35 // pred_region
          %p411 = scmp.lt.s32.totalorder %s20, 1
          %s412 = scalar_select %p411, %s20, 1
          %s413 = smul.addr %s412, 8
          %s414 = smul.addr %s413, 4
          %s415 = scalar_lea.vmem %s6, %s414
        $region52: #{gptj_model.1} parent=35 // pred_fallthru
          _
        // Predicated region
        $region53: #{gptj_model.1} parent=35 // pred_check
          %p416 = pneg %p207
        $region54: #{gptj_model.1} parent=35 // pred_check_branch
          %418 = sbr.rel (%p416) target = $region56
        $region55: #{gptj_model.1} parent=35 // pred_region
          %p419 = scmp.lt.s32.totalorder %s20, 1
          %s420 = scalar_select %p419, %s20, 1
          %s421 = smul.addr %s420, 16
          %s422 = smul.addr %s421, 4
          %s423 = scalar_lea.vmem %s7, %s422
        $region56: #{gptj_model.1} parent=35 // pred_fallthru
          _
        // Predicated region
        $region57: #{gptj_model.1} parent=35 // pred_check
          %p424 = pneg %p233
        $region58: #{gptj_model.1} parent=35 // pred_check_branch
          %426 = sbr.rel (%p424) target = $region60
        $region59: #{gptj_model.1} parent=35 // pred_region
          %p427 = scmp.lt.s32.totalorder %s20, 1
          %s428 = scalar_select %p427, %s20, 1
          %s429 = smul.addr %s428, 2
          %s430 = scalar_lea.vmem %s8, %s429
        $region60: #{gptj_model.1} parent=35 // pred_fallthru
          _
        // Predicated region
        $region61: #{gptj_model.1} parent=35 // pred_check
          %p431 = pneg %p259
        $region62: #{gptj_model.1} parent=35 // pred_check_branch
          %433 = sbr.rel (%p431) target = $region64
        $region63: #{gptj_model.1} parent=35 // pred_region
          %p434 = scmp.lt.s32.totalorder %s20, 1
          %s435 = scalar_select %p434, %s20, 1
          %s436 = smul.addr %s435, 32
          %s437 = smul.addr %s436, 4
          %s438 = scalar_lea.vmem %s9, %s437
        $region64: #{gptj_model.1} parent=35 // pred_fallthru
          _
        // Predicated region
        $region65: #{gptj_model.1} parent=35 // pred_check
          %p439 = pneg %p285
        $region66: #{gptj_model.1} parent=35 // pred_check_branch
          %441 = sbr.rel (%p439) target = $region68
        $region67: #{gptj_model.1} parent=35 // pred_region
          %p442 = scmp.lt.s32.totalorder %s20, 1
          %s443 = scalar_select %p442, %s20, 1
          %s444 = scalar_lea.vmem %s10, %s443
        $region68: #{gptj_model.1} parent=35 // pred_fallthru
          _
      $region36: #{gptj_model.1} parent=5 // pred_fallthru
        _
      %p445 = scmp.le.s32.totalorder 1, %s20
      %p446 = scmp.lt.s32.totalorder %s20, 3
      %p447 = pnand %p445, %p446
      %p448 = pneg %p447
      // Predicated region
      $region69: #{gptj_model.1} parent=5 // pred_check
        _
      $region70: #{gptj_model.1} parent=5 // pred_check_branch
        %450 = sbr.rel (%p447) target = $region72
      $region71: #{gptj_model.1} parent=5 // pred_region
        %s451 = ssub.s32 %s20, 1
        %p452 = pneg %p41
        %p453 = pneg %p38
        %p454 = pneg %p62
        %p455 = pneg %p59
        %p456 = pneg %p83
        %p457 = pneg %p80
        %p458 = scmp.lt.s32.totalorder %s25, 1
        %s459 = scalar_select %p458, %s25, 1
        %s460 = scalar_lea.vmem %s3, %s459
        %p461 = pneg %p109
        %p462 = pneg %p106
        %p463 = scmp.lt.s32.totalorder %s25, 1
        %s464 = scalar_select %p463, %s25, 1
        %s465 = scalar_lea.vmem %s4, %s464
        %p466 = pneg %p135
        %p467 = pneg %p132
        %p468 = scmp.lt.s32.totalorder %s25, 1
        %s469 = scalar_select %p468, %s25, 1
        %s470 = smul.addr %s469, 16
        %s471 = smul.addr %s470, 4
        %s472 = scalar_lea.vmem %s5, %s471
        %p473 = pneg %p161
        %p474 = pneg %p158
        %p475 = scmp.lt.s32.totalorder %s25, 1
        %s476 = scalar_select %p475, %s25, 1
        %s477 = smul.addr %s476, 8
        %s478 = smul.addr %s477, 4
        %s479 = scalar_lea.vmem %s6, %s478
        %p480 = pneg %p187
        %p481 = pneg %p184
        %p482 = scmp.lt.s32.totalorder %s25, 1
        %s483 = scalar_select %p482, %s25, 1
        %s484 = smul.addr %s483, 16
        %s485 = smul.addr %s484, 4
        %s486 = scalar_lea.vmem %s7, %s485
        %p487 = pneg %p213
        %p488 = pneg %p210
        %p489 = scmp.lt.s32.totalorder %s25, 1
        %s490 = scalar_select %p489, %s25, 1
        %s491 = smul.addr %s490, 2
        %s492 = scalar_lea.vmem %s8, %s491
        %p493 = pneg %p239
        %p494 = pneg %p236
        %p495 = scmp.lt.s32.totalorder %s25, 1
        %s496 = scalar_select %p495, %s25, 1
        %s497 = smul.addr %s496, 32
        %s498 = smul.addr %s497, 4
        %s499 = scalar_lea.vmem %s9, %s498
        %p500 = pneg %p265
        %p501 = pneg %p262
        %p502 = scmp.lt.s32.totalorder %s25, 1
        %s503 = scalar_select %p502, %s25, 1
        %s504 = scalar_lea.vmem %s10, %s503
        %p505 = pneg %p291
        %p506 = pneg %p288
        %p507 = pneg %p312
        %p508 = pneg %p309
        %p509 = pneg %p333
        %p510 = pneg %p330
        %p511 = pneg %p354
        %p512 = pneg %p351
        %p513 = scmp.lt.s32.totalorder %s25, 1
        %s514 = scalar_select %p513, %s25, 1
        %s515 = scalar_lea.vmem %s3, %s514
        %p516 = scmp.lt.s32.totalorder %s25, 1
        %s517 = scalar_select %p516, %s25, 1
        %s518 = scalar_lea.vmem %s4, %s517
        %p519 = scmp.lt.s32.totalorder %s25, 1
        %s520 = scalar_select %p519, %s25, 1
        %s521 = smul.addr %s520, 16
        %s522 = smul.addr %s521, 4
        %s523 = scalar_lea.vmem %s5, %s522
        %p524 = scmp.lt.s32.totalorder %s25, 1
        %s525 = scalar_select %p524, %s25, 1
        %s526 = smul.addr %s525, 8
        %s527 = smul.addr %s526, 4
        %s528 = scalar_lea.vmem %s6, %s527
        %p529 = scmp.lt.s32.totalorder %s25, 1
        %s530 = scalar_select %p529, %s25, 1
        %s531 = smul.addr %s530, 16
        %s532 = smul.addr %s531, 4
        %s533 = scalar_lea.vmem %s7, %s532
        %p534 = scmp.lt.s32.totalorder %s25, 1
        %s535 = scalar_select %p534, %s25, 1
        %s536 = smul.addr %s535, 2
        %s537 = scalar_lea.vmem %s8, %s536
        %p538 = scmp.lt.s32.totalorder %s25, 1
        %s539 = scalar_select %p538, %s25, 1
        %s540 = smul.addr %s539, 32
        %s541 = smul.addr %s540, 4
        %s542 = scalar_lea.vmem %s9, %s541
        %p543 = scmp.lt.s32.totalorder %s25, 1
        %s544 = scalar_select %p543, %s25, 1
        %s545 = scalar_lea.vmem %s10, %s544
        %p547 = scmp.eq.s32.totalorder %s25, 0
        // Predicated region
        $region73: #{gptj_model.1} parent=71 // pred_check
          %p548 = pneg %p547
        $region74: #{gptj_model.1} parent=71 // pred_check_branch
          %550 = sbr.rel (%p548) target = $region76
        $region75: #{gptj_model.1} parent=71 // pred_region
          %v551 = vld [vmem:[%s0] sm:$0xff]
          %vm552 = vcmask 523264
          %553 = vst.msk [vmem:[#allocation2] sm:$0xff] %vm552, %v551
        $region76: #{gptj_model.1} parent=71 // pred_fallthru
          _
        %v554 = vld [vmem:[#allocation2] sm:$0xff]
        %v555 = vld [vmem:[%s515] sm:$0x1]
        %v556 = vld [vmem:[%s518] sm:$0x1]
        %vm557 = vcmask 523264
        %v558 = vsel %vm557, %v554, 0.0
        %559 = vadd.xlane.f32.xlu0 %v558
        %v560 = vpop.xlane.xlu0 %559
        %v561 = vrcp.pop 64.0
        %v562 = vmul.f32 %v560, %v561
        %v563 = vsub.f32 %v554, %v562
        %v564 = vmul.f32 %v563, %v563
        %v565 = vsel %vm557, %v564, 0.0
        %566 = vadd.xlane.f32.xlu0 %v565
        %v567 = vpop.xlane.xlu0 %566
        %v568 = vmul.f32 %v567, %v561
        %v569 = vadd.f32 %v568, 1e-05
        %v570 = vrsqrt.pop %v569
        %v571 = vmul.f32 %v563, %v570
        %v573 = vlaneseq
        %v574 = vshrl.u32 %v573, 7
        %v575 = vsub.s32 0, %v574
        %v576 = vrot.slane %v555, %v575
        %v578 = vmul.f32 %v571, %v576
        %v580 = vlaneseq
        %v581 = vshrl.u32 %v580, 7
        %v582 = vsub.s32 0, %v581
        %v583 = vrot.slane %v556, %v582
        %v585 = vadd.f32 %v578, %v583
        %v586 = vpack.c.bf16 %v585, %v585
        %v587 = vld [vmem:[%s523] sm:$0xff]
        %v588 = vld [vmem:[%s523 + $0x8] sm:$0xff]
        %v589 = vld [vmem:[%s523 + $0x10] sm:$0xff]
        %v590 = vld [vmem:[%s523 + $0x18] sm:$0xff]
        %v591 = vld [vmem:[%s523 + $0x20] sm:$0xff]
        %v592 = vld [vmem:[%s523 + $0x28] sm:$0xff]
        %v593 = vld [vmem:[%s523 + $0x30] sm:$0xff]
        %v594 = vld [vmem:[%s523 + $0x38] sm:$0xff]
        %v603 = vunpack.c.l.b16 %v587
        %v604 = vunpack.c.h.b16 %v587
        %v605 = vunpack.c.l.b16 %v588
        %v606 = vunpack.c.h.b16 %v588
        %v607 = vunpack.c.l.b16 %v589
        %v608 = vunpack.c.h.b16 %v589
        %v609 = vunpack.c.l.b16 %v590
        %v610 = vunpack.c.h.b16 %v590
        %v611 = vunpack.c.l.b16 %v591
        %v612 = vunpack.c.h.b16 %v591
        %v613 = vunpack.c.l.b16 %v592
        %v614 = vunpack.c.h.b16 %v592
        %v615 = vunpack.c.l.b16 %v593
        %v616 = vunpack.c.h.b16 %v593
        %v617 = vunpack.c.l.b16 %v594
        %v618 = vunpack.c.h.b16 %v594
        %v619 = vpack.c.b16 %v605, %v603
        %v620 = vpack.c.b16 %v606, %v604
        %v621 = vpack.c.b16 %v609, %v607
        %v622 = vpack.c.b16 %v610, %v608
        %v623 = vpack.c.b16 %v613, %v611
        %v624 = vpack.c.b16 %v614, %v612
        %v625 = vpack.c.b16 %v617, %v615
        %v626 = vpack.c.b16 %v618, %v616
        %v636 = vsel %vm557, %v586, 0
        %638 = vmatprep.subr.bf16.mxu0 0
        %639 = vmatpush1.bf16.msra.mxu0 0
        %640 = vmatprep.subr.bf16.mxu0 0
        %641 = vmatpush1.bf16.msra.mxu0 0
        %642 = vmatprep.subr.bf16.mxu0 0
        %643 = vmatpush1.bf16.msra.mxu0 0
        %644 = vmatprep.subr.bf16.mxu0 0
        %645 = vmatpush1.bf16.msra.mxu0 0
        %646 = vmatprep.subr.bf16.mxu0 %v626
        %647 = vmatpush1.bf16.msra.mxu0 %v625
        %648 = vmatprep.subr.bf16.mxu0 %v624
        %649 = vmatpush1.bf16.msra.mxu0 %v623
        %650 = vmatprep.subr.bf16.mxu0 %v622
        %651 = vmatpush1.bf16.msra.mxu0 %v621
        %652 = vmatprep.subr.bf16.mxu0 %v620
        %653 = vmatpush1.bf16.msra.mxu0 %v619
        %654 = vmatprep.subr.bf16.mxu0 0
        %655 = vmatpush2.bf16.msra.mxu0 0
        %656 = vmatprep.subr.bf16.mxu0 0
        %657 = vmatpush2.bf16.msra.mxu0 0
        %658 = vmatprep.subr.bf16.mxu0 0
        %659 = vmatpush2.bf16.msra.mxu0 0
        %660 = vmatprep.subr.bf16.mxu0 0
        %661 = vmatpush2.bf16.msra.mxu0 0
        %662 = vmatprep.subr.bf16.mxu0 0
        %663 = vmatpush2.bf16.msra.mxu0 0
        %664 = vmatprep.subr.bf16.mxu0 0
        %665 = vmatpush2.bf16.msra.mxu0 0
        %666 = vmatprep.subr.bf16.mxu0 0
        %667 = vmatpush2.bf16.msra.mxu0 0
        %668 = vmatprep.subr.bf16.mxu0 0
        %669 = vmatpush2.bf16.msra.mxu0 0
        %670 = vmatprep.mubr.bf16.mxu0 0
        %671 = vmatmul.mubr.bf16.gmra.mxu0 %v636
        %v672 = vpop.f32.mrf.mxu0
        %v673 = vadd.f32 0.0, %v672
        %v674 = vpop.f32.mrf.mxu0
        %v675 = vadd.f32 0.0, %v674
        %v676 = vpop.f32.mrf.mxu0
        %v677 = vpop.f32.mrf.mxu0
        %678 = vdwg.mxu0
        %v679 = vld [vmem:[%s1] sm:$0xff]
        %v680 = vld [vmem:[%s2] sm:$0xff]
        %v681 = vlaneseq
        %v682 = vshrl.u32 %v681, 7
        %v683 = vlaneseq
        %v684 = vand.u32 %v683, 127
        %vm685 = vcmp.le.s32.totalorder %v684, %v682
        %v686 = vsel %vm685, 0.0, -1e+30
        %688 = vrot.lane.b32.xlu0 %v673, 124
        %v689 = vpop.permute.xlu0 %688
        %691 = vrot.lane.b32.xlu0 %v673, 4
        %v692 = vpop.permute.xlu0 %691
        %vm694 = vcmask 31744
        %v695 = vsel %vm694, %v689, %v692
        %vm696 = vcmask 64512
        %v697 = vsel %vm696, %v695, %v673
        %698 = vrot.lane.b32.xlu0 %v673, 60
        %v699 = vpop.permute.xlu0 %698
        %701 = vrot.lane.b32.xlu0 %v673, 68
        %v702 = vpop.permute.xlu0 %701
        %704 = vrot.lane.b32.xlu0 %v673, 64
        %v705 = vpop.permute.xlu0 %704
        %v707 = vsel %vm694, %v699, %v702
        %v708 = vsel %vm696, %v707, %v705
        %v709 = vmul.f32 %v673, %v679
        %v710 = vmul.f32 %v697, %v680
        %v711 = vadd.f32 %v709, %v710
        %713 = vrot.lane.b32.xlu0 %v679, 64
        %v714 = vpop.permute.xlu0 %713
        %v716 = vmul.f32 %v673, %v714
        %v717 = vmul.f32 %v708, %v680
        %719 = vrot.lane.b32.xlu0 %v717, 64
        %v720 = vpop.permute.xlu0 %719
        %v722 = vadd.f32 %v716, %v720
        %v723 = vpack.c.bf16 %v711, %v711
        %v724 = vpack.c.bf16 %v722, %v722
        %726 = vrot.lane.b32.xlu0 %v724, 64
        %v727 = vpop.permute.xlu0 %726
        %vm728 = vcmask 130048
        %v730 = vsel %vm728, %v723, 0
        %v733 = vsel %vm728, %v727, 0
        %735 = vmatprep.subr.bf16.mxu0 0
        %736 = vmatpush1.bf16.xpose.msra.mxu0 0
        %737 = vmatprep.subr.bf16.mxu0 0
        %738 = vmatpush1.bf16.xpose.msra.mxu0 0
        %739 = vmatprep.subr.bf16.mxu0 0
        %740 = vmatpush1.bf16.xpose.msra.mxu0 0
        %741 = vmatprep.subr.bf16.mxu0 0
        %742 = vmatpush1.bf16.xpose.msra.mxu0 0
        %743 = vmatprep.subr.bf16.mxu0 0
        %744 = vmatpush1.bf16.xpose.msra.mxu0 0
        %745 = vmatprep.subr.bf16.mxu0 0
        %746 = vmatpush1.bf16.xpose.msra.mxu0 0
        %747 = vmatprep.subr.bf16.mxu0 0
        %748 = vmatpush1.bf16.xpose.msra.mxu0 0
        %749 = vmatprep.subr.bf16.mxu0 0
        %750 = vmatpush1.bf16.xpose.msra.mxu0 %v733
        %751 = vmatprep.subr.bf16.mxu0 0
        %752 = vmatpush2.bf16.xpose.msra.mxu0 0
        %753 = vmatprep.subr.bf16.mxu0 0
        %754 = vmatpush2.bf16.xpose.msra.mxu0 0
        %755 = vmatprep.subr.bf16.mxu0 0
        %756 = vmatpush2.bf16.xpose.msra.mxu0 0
        %757 = vmatprep.subr.bf16.mxu0 0
        %758 = vmatpush2.bf16.xpose.msra.mxu0 0
        %759 = vmatprep.subr.bf16.mxu0 0
        %760 = vmatpush2.bf16.xpose.msra.mxu0 0
        %761 = vmatprep.subr.bf16.mxu0 0
        %762 = vmatpush2.bf16.xpose.msra.mxu0 0
        %763 = vmatprep.subr.bf16.mxu0 0
        %764 = vmatpush2.bf16.xpose.msra.mxu0 0
        %765 = vmatprep.subr.bf16.mxu0 0
        %766 = vmatpush2.bf16.xpose.msra.mxu0 0
        %767 = vmatprep.mubr.bf16.mxu0 0
        %768 = vmatmul.mubr.bf16.gmra.mxu0 %v730
        %v769 = vpop.f32.mrf.mxu0
        %v770 = vadd.f32 %v686, %v769
        %v771 = vpop.f32.mrf.mxu0
        %v772 = vpop.f32.mrf.mxu0
        %v773 = vpop.f32.mrf.mxu0
        %774 = vdwg.mxu0
        %v775 = vsel %vm696, %v770, -inf
        %776 = vmax.xlane.f32.xlu0 %v775
        %v777 = vpop.xlane.xlu0 %776
        %v778 = vsub.f32 %v770, %v777
        %v779 = vmul.f32 %v778, 1.442695
        %v780 = vpow.pop %v779
        %v781 = vsel %vm696, %v780, 0.0
        %782 = vadd.xlane.f32.xlu0 %v781
        %v783 = vpop.xlane.xlu0 %782
        %v784 = vpack.c.bf16 %v780, %v780
        %v785 = vpack.c.bf16 %v675, %v675
        %v787 = vsel %vm696, %v784, 0
        %vm789 = vcmask 1043456
        %v791 = vsel %vm789, %v785, 0
        %793 = vmatprep.subr.bf16.mxu0 0
        %794 = vmatpush1.bf16.msra.mxu0 0
        %795 = vmatprep.subr.bf16.mxu0 0
        %796 = vmatpush1.bf16.msra.mxu0 0
        %797 = vmatprep.subr.bf16.mxu0 0
        %798 = vmatpush1.bf16.msra.mxu0 0
        %799 = vmatprep.subr.bf16.mxu0 0
        %800 = vmatpush1.bf16.msra.mxu0 0
        %801 = vmatprep.subr.bf16.mxu0 0
        %802 = vmatpush1.bf16.msra.mxu0 0
        %803 = vmatprep.subr.bf16.mxu0 0
        %804 = vmatpush1.bf16.msra.mxu0 0
        %805 = vmatprep.subr.bf16.mxu0 0
        %806 = vmatpush1.bf16.msra.mxu0 0
        %807 = vmatprep.subr.bf16.mxu0 0
        %808 = vmatpush1.bf16.msra.mxu0 %v791
        %809 = vmatprep.subr.bf16.mxu0 0
        %810 = vmatpush2.bf16.msra.mxu0 0
        %811 = vmatprep.subr.bf16.mxu0 0
        %812 = vmatpush2.bf16.msra.mxu0 0
        %813 = vmatprep.subr.bf16.mxu0 0
        %814 = vmatpush2.bf16.msra.mxu0 0
        %815 = vmatprep.subr.bf16.mxu0 0
        %816 = vmatpush2.bf16.msra.mxu0 0
        %817 = vmatprep.subr.bf16.mxu0 0
        %818 = vmatpush2.bf16.msra.mxu0 0
        %819 = vmatprep.subr.bf16.mxu0 0
        %820 = vmatpush2.bf16.msra.mxu0 0
        %821 = vmatprep.subr.bf16.mxu0 0
        %822 = vmatpush2.bf16.msra.mxu0 0
        %823 = vmatprep.subr.bf16.mxu0 0
        %824 = vmatpush2.bf16.msra.mxu0 0
        %825 = vmatprep.mubr.bf16.mxu0 0
        %826 = vmatmul.mubr.bf16.gmra.mxu0 %v787
        %v827 = vpop.f32.mrf.mxu0
        %v828 = vadd.f32 0.0, %v827
        %v829 = vpop.f32.mrf.mxu0
        %v830 = vpop.f32.mrf.mxu0
        %v831 = vpop.f32.mrf.mxu0
        %832 = vdwg.mxu0
        %v833 = vrcp.pop %v783
        %v834 = vmul.f32 %v828, %v833
        %835 = vst.msk [vmem:[#allocation3] sm:$0xff] %vm728, %v834
        %836 = vrot.lane.b32.xlu0 %v673, 108
        %v837 = vpop.permute.xlu0 %836
        %839 = vrot.lane.b32.xlu0 %v673, 116
        %v840 = vpop.permute.xlu0 %839
        %842 = vrot.lane.b32.xlu0 %v673, 112
        %v843 = vpop.permute.xlu0 %842
        %v845 = vsel %vm694, %v837, %v840
        %v846 = vsel %vm696, %v845, %v843
        %847 = vrot.lane.b32.xlu0 %v673, 44
        %v848 = vpop.permute.xlu0 %847
        %850 = vrot.lane.b32.xlu0 %v673, 52
        %v851 = vpop.permute.xlu0 %850
        %853 = vrot.lane.b32.xlu0 %v673, 48
        %v854 = vpop.permute.xlu0 %853
        %v856 = vsel %vm694, %v848, %v851
        %v857 = vsel %vm696, %v856, %v854
        %858 = vrot.lane.b32.xlu0 %v679, 16
        %v859 = vpop.permute.xlu0 %858
        %v861 = vmul.f32 %v673, %v859
        %v862 = vmul.f32 %v846, %v680
        %864 = vrot.lane.b32.xlu0 %v862, 16
        %v865 = vpop.permute.xlu0 %864
        %v867 = vadd.f32 %v861, %v865
        %868 = vrot.lane.b32.xlu0 %v679, 80
        %v869 = vpop.permute.xlu0 %868
        %v871 = vmul.f32 %v673, %v869
        %v872 = vmul.f32 %v857, %v680
        %874 = vrot.lane.b32.xlu0 %v872, 80
        %v875 = vpop.permute.xlu0 %874
        %v877 = vadd.f32 %v871, %v875
        %v878 = vpack.c.bf16 %v867, %v867
        %v879 = vpack.c.bf16 %v877, %v877
        %881 = vrot.lane.b32.xlu0 %v878, 112
        %v882 = vpop.permute.xlu0 %881
        %884 = vrot.lane.b32.xlu0 %v879, 48
        %v885 = vpop.permute.xlu0 %884
        %v887 = vsel %vm728, %v882, 0
        %v890 = vsel %vm728, %v885, 0
        %892 = vmatprep.subr.bf16.mxu0 0
        %893 = vmatpush1.bf16.xpose.msra.mxu0 0
        %894 = vmatprep.subr.bf16.mxu0 0
        %895 = vmatpush1.bf16.xpose.msra.mxu0 0
        %896 = vmatprep.subr.bf16.mxu0 0
        %897 = vmatpush1.bf16.xpose.msra.mxu0 0
        %898 = vmatprep.subr.bf16.mxu0 0
        %899 = vmatpush1.bf16.xpose.msra.mxu0 0
        %900 = vmatprep.subr.bf16.mxu0 0
        %901 = vmatpush1.bf16.xpose.msra.mxu0 0
        %902 = vmatprep.subr.bf16.mxu0 0
        %903 = vmatpush1.bf16.xpose.msra.mxu0 0
        %904 = vmatprep.subr.bf16.mxu0 0
        %905 = vmatpush1.bf16.xpose.msra.mxu0 0
        %906 = vmatprep.subr.bf16.mxu0 0
        %907 = vmatpush1.bf16.xpose.msra.mxu0 %v890
        %908 = vmatprep.subr.bf16.mxu0 0
        %909 = vmatpush2.bf16.xpose.msra.mxu0 0
        %910 = vmatprep.subr.bf16.mxu0 0
        %911 = vmatpush2.bf16.xpose.msra.mxu0 0
        %912 = vmatprep.subr.bf16.mxu0 0
        %913 = vmatpush2.bf16.xpose.msra.mxu0 0
        %914 = vmatprep.subr.bf16.mxu0 0
        %915 = vmatpush2.bf16.xpose.msra.mxu0 0
        %916 = vmatprep.subr.bf16.mxu0 0
        %917 = vmatpush2.bf16.xpose.msra.mxu0 0
        %918 = vmatprep.subr.bf16.mxu0 0
        %919 = vmatpush2.bf16.xpose.msra.mxu0 0
        %920 = vmatprep.subr.bf16.mxu0 0
        %921 = vmatpush2.bf16.xpose.msra.mxu0 0
        %922 = vmatprep.subr.bf16.mxu0 0
        %923 = vmatpush2.bf16.xpose.msra.mxu0 0
        %924 = vmatprep.mubr.bf16.mxu0 0
        %925 = vmatmul.mubr.bf16.gmra.mxu0 %v887
        %v926 = vpop.f32.mrf.mxu0
        %v927 = vadd.f32 %v686, %v926
        %v928 = vpop.f32.mrf.mxu0
        %v929 = vpop.f32.mrf.mxu0
        %v930 = vpop.f32.mrf.mxu0
        %931 = vdwg.mxu0
        %v932 = vsel %vm696, %v927, -inf
        %933 = vmax.xlane.f32.xlu0 %v932
        %v934 = vpop.xlane.xlu0 %933
        %v935 = vsub.f32 %v927, %v934
        %v936 = vmul.f32 %v935, 1.442695
        %v937 = vpow.pop %v936
        %v938 = vsel %vm696, %v937, 0.0
        %939 = vadd.xlane.f32.xlu0 %v938
        %v940 = vpop.xlane.xlu0 %939
        %v941 = vpack.c.bf16 %v937, %v937
        %943 = vrot.lane.b32.xlu0 %v785, 112
        %v944 = vpop.permute.xlu0 %943
        %v946 = vsel %vm696, %v941, 0
        %v949 = vsel %vm789, %v944, 0
        %951 = vmatprep.subr.bf16.mxu0 0
        %952 = vmatpush1.bf16.msra.mxu0 0
        %953 = vmatprep.subr.bf16.mxu0 0
        %954 = vmatpush1.bf16.msra.mxu0 0
        %955 = vmatprep.subr.bf16.mxu0 0
        %956 = vmatpush1.bf16.msra.mxu0 0
        %957 = vmatprep.subr.bf16.mxu0 0
        %958 = vmatpush1.bf16.msra.mxu0 0
        %959 = vmatprep.subr.bf16.mxu0 0
        %960 = vmatpush1.bf16.msra.mxu0 0
        %961 = vmatprep.subr.bf16.mxu0 0
        %962 = vmatpush1.bf16.msra.mxu0 0
        %963 = vmatprep.subr.bf16.mxu0 0
        %964 = vmatpush1.bf16.msra.mxu0 0
        %965 = vmatprep.subr.bf16.mxu0 0
        %966 = vmatpush1.bf16.msra.mxu0 %v949
        %967 = vmatprep.subr.bf16.mxu0 0
        %968 = vmatpush2.bf16.msra.mxu0 0
        %969 = vmatprep.subr.bf16.mxu0 0
        %970 = vmatpush2.bf16.msra.mxu0 0
        %971 = vmatprep.subr.bf16.mxu0 0
        %972 = vmatpush2.bf16.msra.mxu0 0
        %973 = vmatprep.subr.bf16.mxu0 0
        %974 = vmatpush2.bf16.msra.mxu0 0
        %975 = vmatprep.subr.bf16.mxu0 0
        %976 = vmatpush2.bf16.msra.mxu0 0
        %977 = vmatprep.subr.bf16.mxu0 0
        %978 = vmatpush2.bf16.msra.mxu0 0
        %979 = vmatprep.subr.bf16.mxu0 0
        %980 = vmatpush2.bf16.msra.mxu0 0
        %981 = vmatprep.subr.bf16.mxu0 0
        %982 = vmatpush2.bf16.msra.mxu0 0
        %983 = vmatprep.mubr.bf16.mxu0 0
        %984 = vmatmul.mubr.bf16.gmra.mxu0 %v946
        %v985 = vpop.f32.mrf.mxu0
        %v986 = vadd.f32 0.0, %v985
        %v987 = vpop.f32.mrf.mxu0
        %v988 = vpop.f32.mrf.mxu0
        %v989 = vpop.f32.mrf.mxu0
        %990 = vdwg.mxu0
        %v991 = vrcp.pop %v940
        %v992 = vmul.f32 %v986, %v991
        %994 = vrot.lane.b32.xlu0 %v992, 16
        %v995 = vpop.permute.xlu0 %994
        %vm997 = vcmask 261248
        %998 = vst.msk [vmem:[#allocation3] sm:$0xff] %vm997, %v995
        %999 = vrot.lane.b32.xlu0 %v673, 92
        %v1000 = vpop.permute.xlu0 %999
        %1002 = vrot.lane.b32.xlu0 %v673, 100
        %v1003 = vpop.permute.xlu0 %1002
        %1005 = vrot.lane.b32.xlu0 %v673, 96
        %v1006 = vpop.permute.xlu0 %1005
        %v1008 = vsel %vm694, %v1000, %v1003
        %v1009 = vsel %vm696, %v1008, %v1006
        %1010 = vrot.lane.b32.xlu0 %v673, 28
        %v1011 = vpop.permute.xlu0 %1010
        %1013 = vrot.lane.b32.xlu0 %v673, 36
        %v1014 = vpop.permute.xlu0 %1013
        %1016 = vrot.lane.b32.xlu0 %v673, 32
        %v1017 = vpop.permute.xlu0 %1016
        %v1019 = vsel %vm694, %v1011, %v1014
        %v1020 = vsel %vm696, %v1019, %v1017
        %1021 = vrot.lane.b32.xlu0 %v679, 32
        %v1022 = vpop.permute.xlu0 %1021
        %v1024 = vmul.f32 %v673, %v1022
        %v1025 = vmul.f32 %v1009, %v680
        %1027 = vrot.lane.b32.xlu0 %v1025, 32
        %v1028 = vpop.permute.xlu0 %1027
        %v1030 = vadd.f32 %v1024, %v1028
        %1031 = vrot.lane.b32.xlu0 %v679, 96
        %v1032 = vpop.permute.xlu0 %1031
        %v1034 = vmul.f32 %v673, %v1032
        %v1035 = vmul.f32 %v1020, %v680
        %1037 = vrot.lane.b32.xlu0 %v1035, 96
        %v1038 = vpop.permute.xlu0 %1037
        %v1040 = vadd.f32 %v1034, %v1038
        %v1041 = vpack.c.bf16 %v1030, %v1030
        %v1042 = vpack.c.bf16 %v1040, %v1040
        %1044 = vrot.lane.b32.xlu0 %v1041, 96
        %v1045 = vpop.permute.xlu0 %1044
        %1047 = vrot.lane.b32.xlu0 %v1042, 32
        %v1048 = vpop.permute.xlu0 %1047
        %v1050 = vsel %vm728, %v1045, 0
        %v1053 = vsel %vm728, %v1048, 0
        %1055 = vmatprep.subr.bf16.mxu0 0
        %1056 = vmatpush1.bf16.xpose.msra.mxu0 0
        %1057 = vmatprep.subr.bf16.mxu0 0
        %1058 = vmatpush1.bf16.xpose.msra.mxu0 0
        %1059 = vmatprep.subr.bf16.mxu0 0
        %1060 = vmatpush1.bf16.xpose.msra.mxu0 0
        %1061 = vmatprep.subr.bf16.mxu0 0
        %1062 = vmatpush1.bf16.xpose.msra.mxu0 0
        %1063 = vmatprep.subr.bf16.mxu0 0
        %1064 = vmatpush1.bf16.xpose.msra.mxu0 0
        %1065 = vmatprep.subr.bf16.mxu0 0
        %1066 = vmatpush1.bf16.xpose.msra.mxu0 0
        %1067 = vmatprep.subr.bf16.mxu0 0
        %1068 = vmatpush1.bf16.xpose.msra.mxu0 0
        %1069 = vmatprep.subr.bf16.mxu0 0
        %1070 = vmatpush1.bf16.xpose.msra.mxu0 %v1053
        %1071 = vmatprep.subr.bf16.mxu0 0
        %1072 = vmatpush2.bf16.xpose.msra.mxu0 0
        %1073 = vmatprep.subr.bf16.mxu0 0
        %1074 = vmatpush2.bf16.xpose.msra.mxu0 0
        %1075 = vmatprep.subr.bf16.mxu0 0
        %1076 = vmatpush2.bf16.xpose.msra.mxu0 0
        %1077 = vmatprep.subr.bf16.mxu0 0
        %1078 = vmatpush2.bf16.xpose.msra.mxu0 0
        %1079 = vmatprep.subr.bf16.mxu0 0
        %1080 = vmatpush2.bf16.xpose.msra.mxu0 0
        %1081 = vmatprep.subr.bf16.mxu0 0
        %1082 = vmatpush2.bf16.xpose.msra.mxu0 0
        %1083 = vmatprep.subr.bf16.mxu0 0
        %1084 = vmatpush2.bf16.xpose.msra.mxu0 0
        %1085 = vmatprep.subr.bf16.mxu0 0
        %1086 = vmatpush2.bf16.xpose.msra.mxu0 0
        %1087 = vmatprep.mubr.bf16.mxu0 0
        %1088 = vmatmul.mubr.bf16.gmra.mxu0 %v1050
        %v1089 = vpop.f32.mrf.mxu0
        %v1090 = vadd.f32 %v686, %v1089
        %v1091 = vpop.f32.mrf.mxu0
        %v1092 = vpop.f32.mrf.mxu0
        %v1093 = vpop.f32.mrf.mxu0
        %1094 = vdwg.mxu0
        %v1095 = vsel %vm696, %v1090, -inf
        %1096 = vmax.xlane.f32.xlu0 %v1095
        %v1097 = vpop.xlane.xlu0 %1096
        %v1098 = vsub.f32 %v1090, %v1097
        %v1099 = vmul.f32 %v1098, 1.442695
        %v1100 = vpow.pop %v1099
        %v1101 = vsel %vm696, %v1100, 0.0
        %1102 = vadd.xlane.f32.xlu0 %v1101
        %v1103 = vpop.xlane.xlu0 %1102
        %v1104 = vpack.c.bf16 %v1100, %v1100
        %1105 = vrot.lane.b32.xlu0 %v785, 96
        %v1106 = vpop.permute.xlu0 %1105
        %v1108 = vsel %vm696, %v1104, 0
        %v1111 = vsel %vm789, %v1106, 0
        %1113 = vmatprep.subr.bf16.mxu0 0
        %1114 = vmatpush1.bf16.msra.mxu0 0
        %1115 = vmatprep.subr.bf16.mxu0 0
        %1116 = vmatpush1.bf16.msra.mxu0 0
        %1117 = vmatprep.subr.bf16.mxu0 0
        %1118 = vmatpush1.bf16.msra.mxu0 0
        %1119 = vmatprep.subr.bf16.mxu0 0
        %1120 = vmatpush1.bf16.msra.mxu0 0
        %1121 = vmatprep.subr.bf16.mxu0 0
        %1122 = vmatpush1.bf16.msra.mxu0 0
        %1123 = vmatprep.subr.bf16.mxu0 0
        %1124 = vmatpush1.bf16.msra.mxu0 0
        %1125 = vmatprep.subr.bf16.mxu0 0
        %1126 = vmatpush1.bf16.msra.mxu0 0
        %1127 = vmatprep.subr.bf16.mxu0 0
        %1128 = vmatpush1.bf16.msra.mxu0 %v1111
        %1129 = vmatprep.subr.bf16.mxu0 0
        %1130 = vmatpush2.bf16.msra.mxu0 0
        %1131 = vmatprep.subr.bf16.mxu0 0
        %1132 = vmatpush2.bf16.msra.mxu0 0
        %1133 = vmatprep.subr.bf16.mxu0 0
        %1134 = vmatpush2.bf16.msra.mxu0 0
        %1135 = vmatprep.subr.bf16.mxu0 0
        %1136 = vmatpush2.bf16.msra.mxu0 0
        %1137 = vmatprep.subr.bf16.mxu0 0
        %1138 = vmatpush2.bf16.msra.mxu0 0
        %1139 = vmatprep.subr.bf16.mxu0 0
        %1140 = vmatpush2.bf16.msra.mxu0 0
        %1141 = vmatprep.subr.bf16.mxu0 0
        %1142 = vmatpush2.bf16.msra.mxu0 0
        %1143 = vmatprep.subr.bf16.mxu0 0
        %1144 = vmatpush2.bf16.msra.mxu0 0
        %1145 = vmatprep.mubr.bf16.mxu0 0
        %1146 = vmatmul.mubr.bf16.gmra.mxu0 %v1108
        %v1147 = vpop.f32.mrf.mxu0
        %v1148 = vadd.f32 0.0, %v1147
        %v1149 = vpop.f32.mrf.mxu0
        %v1150 = vpop.f32.mrf.mxu0
        %v1151 = vpop.f32.mrf.mxu0
        %1152 = vdwg.mxu0
        %v1153 = vrcp.pop %v1103
        %v1154 = vmul.f32 %v1148, %v1153
        %1156 = vrot.lane.b32.xlu0 %v1154, 32
        %v1157 = vpop.permute.xlu0 %1156
        %vm1159 = vcmask 392448
        %1160 = vst.msk [vmem:[#allocation3] sm:$0xff] %vm1159, %v1157
        %1161 = vrot.lane.b32.xlu0 %v673, 76
        %v1162 = vpop.permute.xlu0 %1161
        %1164 = vrot.lane.b32.xlu0 %v673, 84
        %v1165 = vpop.permute.xlu0 %1164
        %1167 = vrot.lane.b32.xlu0 %v673, 80
        %v1168 = vpop.permute.xlu0 %1167
        %v1170 = vsel %vm694, %v1162, %v1165
        %v1171 = vsel %vm696, %v1170, %v1168
        %1172 = vrot.lane.b32.xlu0 %v673, 12
        %v1173 = vpop.permute.xlu0 %1172
        %1175 = vrot.lane.b32.xlu0 %v673, 20
        %v1176 = vpop.permute.xlu0 %1175
        %1178 = vrot.lane.b32.xlu0 %v673, 16
        %v1179 = vpop.permute.xlu0 %1178
        %v1181 = vsel %vm694, %v1173, %v1176
        %v1182 = vsel %vm696, %v1181, %v1179
        %1183 = vrot.lane.b32.xlu0 %v679, 48
        %v1184 = vpop.permute.xlu0 %1183
        %v1186 = vmul.f32 %v673, %v1184
        %v1187 = vmul.f32 %v1171, %v680
        %1189 = vrot.lane.b32.xlu0 %v1187, 48
        %v1190 = vpop.permute.xlu0 %1189
        %v1192 = vadd.f32 %v1186, %v1190
        %1193 = vrot.lane.b32.xlu0 %v679, 112
        %v1194 = vpop.permute.xlu0 %1193
        %v1196 = vmul.f32 %v673, %v1194
        %v1197 = vmul.f32 %v1182, %v680
        %1199 = vrot.lane.b32.xlu0 %v1197, 112
        %v1200 = vpop.permute.xlu0 %1199
        %v1202 = vadd.f32 %v1196, %v1200
        %v1203 = vpack.c.bf16 %v1192, %v1192
        %v1204 = vpack.c.bf16 %v1202, %v1202
        %1206 = vrot.lane.b32.xlu0 %v1203, 80
        %v1207 = vpop.permute.xlu0 %1206
        %1209 = vrot.lane.b32.xlu0 %v1204, 16
        %v1210 = vpop.permute.xlu0 %1209
        %v1212 = vsel %vm728, %v1207, 0
        %v1215 = vsel %vm728, %v1210, 0
        %1217 = vmatprep.subr.bf16.mxu0 0
        %1218 = vmatpush1.bf16.xpose.msra.mxu0 0
        %1219 = vmatprep.subr.bf16.mxu0 0
        %1220 = vmatpush1.bf16.xpose.msra.mxu0 0
        %1221 = vmatprep.subr.bf16.mxu0 0
        %1222 = vmatpush1.bf16.xpose.msra.mxu0 0
        %1223 = vmatprep.subr.bf16.mxu0 0
        %1224 = vmatpush1.bf16.xpose.msra.mxu0 0
        %1225 = vmatprep.subr.bf16.mxu0 0
        %1226 = vmatpush1.bf16.xpose.msra.mxu0 0
        %1227 = vmatprep.subr.bf16.mxu0 0
        %1228 = vmatpush1.bf16.xpose.msra.mxu0 0
        %1229 = vmatprep.subr.bf16.mxu0 0
        %1230 = vmatpush1.bf16.xpose.msra.mxu0 0
        %1231 = vmatprep.subr.bf16.mxu0 0
        %1232 = vmatpush1.bf16.xpose.msra.mxu0 %v1215
        %1233 = vmatprep.subr.bf16.mxu0 0
        %1234 = vmatpush2.bf16.xpose.msra.mxu0 0
        %1235 = vmatprep.subr.bf16.mxu0 0
        %1236 = vmatpush2.bf16.xpose.msra.mxu0 0
        %1237 = vmatprep.subr.bf16.mxu0 0
        %1238 = vmatpush2.bf16.xpose.msra.mxu0 0
        %1239 = vmatprep.subr.bf16.mxu0 0
        %1240 = vmatpush2.bf16.xpose.msra.mxu0 0
        %1241 = vmatprep.subr.bf16.mxu0 0
        %1242 = vmatpush2.bf16.xpose.msra.mxu0 0
        %1243 = vmatprep.subr.bf16.mxu0 0
        %1244 = vmatpush2.bf16.xpose.msra.mxu0 0
        %1245 = vmatprep.subr.bf16.mxu0 0
        %1246 = vmatpush2.bf16.xpose.msra.mxu0 0
        %1247 = vmatprep.subr.bf16.mxu0 0
        %1248 = vmatpush2.bf16.xpose.msra.mxu0 0
        %1249 = vmatprep.mubr.bf16.mxu0 0
        %1250 = vmatmul.mubr.bf16.gmra.mxu0 %v1212
        %v1251 = vpop.f32.mrf.mxu0
        %v1252 = vadd.f32 %v686, %v1251
        %v1253 = vpop.f32.mrf.mxu0
        %v1254 = vpop.f32.mrf.mxu0
        %v1255 = vpop.f32.mrf.mxu0
        %1256 = vdwg.mxu0
        %v1257 = vsel %vm696, %v1252, -inf
        %1258 = vmax.xlane.f32.xlu0 %v1257
        %v1259 = vpop.xlane.xlu0 %1258
        %v1260 = vsub.f32 %v1252, %v1259
        %v1261 = vmul.f32 %v1260, 1.442695
        %v1262 = vpow.pop %v1261
        %v1263 = vsel %vm696, %v1262, 0.0
        %1264 = vadd.xlane.f32.xlu0 %v1263
        %v1265 = vpop.xlane.xlu0 %1264
        %v1266 = vpack.c.bf16 %v1262, %v1262
        %1267 = vrot.lane.b32.xlu0 %v785, 80
        %v1268 = vpop.permute.xlu0 %1267
        %v1270 = vsel %vm696, %v1266, 0
        %v1273 = vsel %vm789, %v1268, 0
        %1275 = vmatprep.subr.bf16.mxu0 0
        %1276 = vmatpush1.bf16.msra.mxu0 0
        %1277 = vmatprep.subr.bf16.mxu0 0
        %1278 = vmatpush1.bf16.msra.mxu0 0
        %1279 = vmatprep.subr.bf16.mxu0 0
        %1280 = vmatpush1.bf16.msra.mxu0 0
        %1281 = vmatprep.subr.bf16.mxu0 0
        %1282 = vmatpush1.bf16.msra.mxu0 0
        %1283 = vmatprep.subr.bf16.mxu0 0
        %1284 = vmatpush1.bf16.msra.mxu0 0
        %1285 = vmatprep.subr.bf16.mxu0 0
        %1286 = vmatpush1.bf16.msra.mxu0 0
        %1287 = vmatprep.subr.bf16.mxu0 0
        %1288 = vmatpush1.bf16.msra.mxu0 0
        %1289 = vmatprep.subr.bf16.mxu0 0
        %1290 = vmatpush1.bf16.msra.mxu0 %v1273
        %1291 = vmatprep.subr.bf16.mxu0 0
        %1292 = vmatpush2.bf16.msra.mxu0 0
        %1293 = vmatprep.subr.bf16.mxu0 0
        %1294 = vmatpush2.bf16.msra.mxu0 0
        %1295 = vmatprep.subr.bf16.mxu0 0
        %1296 = vmatpush2.bf16.msra.mxu0 0
        %1297 = vmatprep.subr.bf16.mxu0 0
        %1298 = vmatpush2.bf16.msra.mxu0 0
        %1299 = vmatprep.subr.bf16.mxu0 0
        %1300 = vmatpush2.bf16.msra.mxu0 0
        %1301 = vmatprep.subr.bf16.mxu0 0
        %1302 = vmatpush2.bf16.msra.mxu0 0
        %1303 = vmatprep.subr.bf16.mxu0 0
        %1304 = vmatpush2.bf16.msra.mxu0 0
        %1305 = vmatprep.subr.bf16.mxu0 0
        %1306 = vmatpush2.bf16.msra.mxu0 0
        %1307 = vmatprep.mubr.bf16.mxu0 0
        %1308 = vmatmul.mubr.bf16.gmra.mxu0 %v1270
        %v1309 = vpop.f32.mrf.mxu0
        %v1310 = vadd.f32 0.0, %v1309
        %v1311 = vpop.f32.mrf.mxu0
        %v1312 = vpop.f32.mrf.mxu0
        %v1313 = vpop.f32.mrf.mxu0
        %1314 = vdwg.mxu0
        %v1315 = vrcp.pop %v1265
        %v1316 = vmul.f32 %v1310, %v1315
        %1318 = vrot.lane.b32.xlu0 %v1316, 48
        %v1319 = vpop.permute.xlu0 %1318
        %vm1321 = vcmask 523648
        %1322 = vst.msk [vmem:[#allocation3] sm:$0xff] %vm1321, %v1319
        %v1323 = vld [vmem:[#allocation3] sm:$0xff]
        %v1324 = vpack.c.bf16 %v1323, %v1323
        %v1325 = vld [vmem:[%s528] sm:$0xf]
        %v1326 = vld [vmem:[%s528 + $0x4] sm:$0xf]
        %v1327 = vld [vmem:[%s528 + $0x8] sm:$0xf]
        %v1328 = vld [vmem:[%s528 + $0xc] sm:$0xf]
        %v1329 = vld [vmem:[%s528 + $0x10] sm:$0xf]
        %v1330 = vld [vmem:[%s528 + $0x14] sm:$0xf]
        %v1331 = vld [vmem:[%s528 + $0x18] sm:$0xf]
        %v1332 = vld [vmem:[%s528 + $0x1c] sm:$0xf]
        %v1333 = vld [vmem:[%s533] sm:$0xff]
        %v1334 = vld [vmem:[%s533 + $0x8] sm:$0xff]
        %v1335 = vld [vmem:[%s533 + $0x10] sm:$0xff]
        %v1336 = vld [vmem:[%s533 + $0x18] sm:$0xff]
        %v1337 = vld [vmem:[%s533 + $0x20] sm:$0xff]
        %v1338 = vld [vmem:[%s533 + $0x28] sm:$0xff]
        %v1339 = vld [vmem:[%s533 + $0x30] sm:$0xff]
        %v1340 = vld [vmem:[%s533 + $0x38] sm:$0xff]
        %v1341 = vld [vmem:[%s537] sm:$0x3]
        %v1343 = vlaneseq
        %v1344 = vshrl.u32 %v1343, 7
        %v1345 = vsub.s32 0, %v1344
        %v1346 = vrot.slane %v1341, %v1345
        %v1347 = vlaneseq
        %v1348 = vshrl.u32 %v1347, 7
        %v1349 = vsub.s32 1, %v1348
        %v1350 = vrot.slane %v1341, %v1349
        %v1361 = vunpack.c.l.b16 %v1333
        %v1362 = vunpack.c.h.b16 %v1333
        %v1363 = vunpack.c.l.b16 %v1334
        %v1364 = vunpack.c.h.b16 %v1334
        %v1365 = vunpack.c.l.b16 %v1335
        %v1366 = vunpack.c.h.b16 %v1335
        %v1367 = vunpack.c.l.b16 %v1336
        %v1368 = vunpack.c.h.b16 %v1336
        %v1369 = vunpack.c.l.b16 %v1337
        %v1370 = vunpack.c.h.b16 %v1337
        %v1371 = vunpack.c.l.b16 %v1338
        %v1372 = vunpack.c.h.b16 %v1338
        %v1373 = vunpack.c.l.b16 %v1339
        %v1374 = vunpack.c.h.b16 %v1339
        %v1375 = vunpack.c.l.b16 %v1340
        %v1376 = vunpack.c.h.b16 %v1340
        %v1377 = vpack.c.b16 %v1363, %v1361
        %v1378 = vpack.c.b16 %v1364, %v1362
        %v1379 = vpack.c.b16 %v1367, %v1365
        %v1380 = vpack.c.b16 %v1368, %v1366
        %v1381 = vpack.c.b16 %v1371, %v1369
        %v1382 = vpack.c.b16 %v1372, %v1370
        %v1383 = vpack.c.b16 %v1375, %v1373
        %v1384 = vpack.c.b16 %v1376, %v1374
        %1393 = vmatprep.subr.bf16.mxu0 0
        %1394 = vmatpush1.bf16.msra.mxu0 0
        %1395 = vmatprep.subr.bf16.mxu0 0
        %1396 = vmatpush1.bf16.msra.mxu0 0
        %1397 = vmatprep.subr.bf16.mxu0 0
        %1398 = vmatpush1.bf16.msra.mxu0 0
        %1399 = vmatprep.subr.bf16.mxu0 0
        %1400 = vmatpush1.bf16.msra.mxu0 0
        %1401 = vmatprep.subr.bf16.mxu0 %v1384
        %1402 = vmatpush1.bf16.msra.mxu0 %v1383
        %1403 = vmatprep.subr.bf16.mxu0 %v1382
        %1404 = vmatpush1.bf16.msra.mxu0 %v1381
        %1405 = vmatprep.subr.bf16.mxu0 %v1380
        %1406 = vmatpush1.bf16.msra.mxu0 %v1379
        %1407 = vmatprep.subr.bf16.mxu0 %v1378
        %1408 = vmatpush1.bf16.msra.mxu0 %v1377
        %1409 = vmatprep.subr.bf16.mxu0 0
        %1410 = vmatpush2.bf16.msra.mxu0 0
        %1411 = vmatprep.subr.bf16.mxu0 0
        %1412 = vmatpush2.bf16.msra.mxu0 0
        %1413 = vmatprep.subr.bf16.mxu0 0
        %1414 = vmatpush2.bf16.msra.mxu0 0
        %1415 = vmatprep.subr.bf16.mxu0 0
        %1416 = vmatpush2.bf16.msra.mxu0 0
        %1417 = vmatprep.subr.bf16.mxu0 0
        %1418 = vmatpush2.bf16.msra.mxu0 0
        %1419 = vmatprep.subr.bf16.mxu0 0
        %1420 = vmatpush2.bf16.msra.mxu0 0
        %1421 = vmatprep.subr.bf16.mxu0 0
        %1422 = vmatpush2.bf16.msra.mxu0 0
        %1423 = vmatprep.subr.bf16.mxu0 0
        %1424 = vmatpush2.bf16.msra.mxu0 0
        %1425 = vmatprep.mubr.bf16.mxu0 0
        %1426 = vmatmul.mubr.bf16.gmra.mxu0 %v636
        %v1427 = vpop.f32.mrf.mxu0
        %v1428 = vadd.f32 %v1346, %v1427
        %v1429 = vpop.f32.mrf.mxu0
        %v1430 = vadd.f32 %v1350, %v1429
        %v1431 = vpop.f32.mrf.mxu0
        %v1432 = vpop.f32.mrf.mxu0
        %1433 = vdwg.mxu0
        %v1434 = vmul.f32 %v1428, 0.5
        %v1435 = vmul.f32 %v1430, 0.5
        %v1436 = vmul.f32 %v1428, 0.044715
        %v1437 = vmul.f32 %v1430, 0.044715
        %v1438 = vmul.f32 %v1436, %v1428
        %v1439 = vmul.f32 %v1437, %v1430
        %v1440 = vmul.f32 %v1438, %v1428
        %v1441 = vmul.f32 %v1439, %v1430
        %v1442 = vadd.f32 %v1428, %v1440
        %v1443 = vadd.f32 %v1430, %v1441
        %v1444 = vmul.f32 %v1442, 0.7978846
        %v1445 = vmul.f32 %v1443, 0.7978846
        %v1446 = vtanh.pop %v1444
        %v1447 = vtanh.pop %v1445
        %v1448 = vadd.f32 %v1446, 1.0
        %v1449 = vadd.f32 %v1447, 1.0
        %v1450 = vmul.f32 %v1434, %v1448
        %v1451 = vmul.f32 %v1435, %v1449
        %v1452 = vpack.c.bf16 %v1450, %v1450
        %v1453 = vpack.c.bf16 %v1451, %v1451
        %v1454 = vld [vmem:[%s542] sm:$0xf]
        %v1455 = vld [vmem:[%s542 + $0x4] sm:$0xf]
        %v1456 = vld [vmem:[%s542 + $0x8] sm:$0xf]
        %v1457 = vld [vmem:[%s542 + $0xc] sm:$0xf]
        %v1458 = vld [vmem:[%s542 + $0x10] sm:$0xf]
        %v1459 = vld [vmem:[%s542 + $0x14] sm:$0xf]
        %v1460 = vld [vmem:[%s542 + $0x18] sm:$0xf]
        %v1461 = vld [vmem:[%s542 + $0x1c] sm:$0xf]
        %v1462 = vld [vmem:[%s542 + $0x20] sm:$0xf]
        %v1463 = vld [vmem:[%s542 + $0x24] sm:$0xf]
        %v1464 = vld [vmem:[%s542 + $0x28] sm:$0xf]
        %v1465 = vld [vmem:[%s542 + $0x2c] sm:$0xf]
        %v1466 = vld [vmem:[%s542 + $0x30] sm:$0xf]
        %v1467 = vld [vmem:[%s542 + $0x34] sm:$0xf]
        %v1468 = vld [vmem:[%s542 + $0x38] sm:$0xf]
        %v1469 = vld [vmem:[%s542 + $0x3c] sm:$0xf]
        %v1470 = vld [vmem:[%s542 + $0x40] sm:$0xf]
        %v1471 = vld [vmem:[%s542 + $0x44] sm:$0xf]
        %v1472 = vld [vmem:[%s542 + $0x48] sm:$0xf]
        %v1473 = vld [vmem:[%s542 + $0x4c] sm:$0xf]
        %v1474 = vld [vmem:[%s542 + $0x50] sm:$0xf]
        %v1475 = vld [vmem:[%s542 + $0x54] sm:$0xf]
        %v1476 = vld [vmem:[%s542 + $0x58] sm:$0xf]
        %v1477 = vld [vmem:[%s542 + $0x5c] sm:$0xf]
        %v1478 = vld [vmem:[%s542 + $0x60] sm:$0xf]
        %v1479 = vld [vmem:[%s542 + $0x64] sm:$0xf]
        %v1480 = vld [vmem:[%s542 + $0x68] sm:$0xf]
        %v1481 = vld [vmem:[%s542 + $0x6c] sm:$0xf]
        %v1482 = vld [vmem:[%s542 + $0x70] sm:$0xf]
        %v1483 = vld [vmem:[%s542 + $0x74] sm:$0xf]
        %v1484 = vld [vmem:[%s542 + $0x78] sm:$0xf]
        %v1485 = vld [vmem:[%s542 + $0x7c] sm:$0xf]
        %v1486 = vld [vmem:[%s545] sm:$0x1]
        %v1488 = vlaneseq
        %v1489 = vshrl.u32 %v1488, 7
        %v1490 = vsub.s32 0, %v1489
        %v1491 = vrot.slane %v1486, %v1490
        %v1525 = vunpack.c.l.b16 %v1454
        %v1526 = vunpack.c.l.b16 %v1455
        %v1527 = vunpack.c.l.b16 %v1456
        %v1528 = vunpack.c.l.b16 %v1457
        %v1529 = vunpack.c.l.b16 %v1458
        %v1530 = vunpack.c.l.b16 %v1459
        %v1531 = vunpack.c.l.b16 %v1460
        %v1532 = vunpack.c.l.b16 %v1461
        %v1533 = vunpack.c.l.b16 %v1462
        %v1534 = vunpack.c.l.b16 %v1463
        %v1535 = vunpack.c.l.b16 %v1464
        %v1536 = vunpack.c.l.b16 %v1465
        %v1537 = vunpack.c.l.b16 %v1466
        %v1538 = vunpack.c.l.b16 %v1467
        %v1539 = vunpack.c.l.b16 %v1468
        %v1540 = vunpack.c.l.b16 %v1469
        %v1541 = vunpack.c.l.b16 %v1470
        %v1542 = vunpack.c.l.b16 %v1471
        %v1543 = vunpack.c.l.b16 %v1472
        %v1544 = vunpack.c.l.b16 %v1473
        %v1545 = vunpack.c.l.b16 %v1474
        %v1546 = vunpack.c.l.b16 %v1475
        %v1547 = vunpack.c.l.b16 %v1476
        %v1548 = vunpack.c.l.b16 %v1477
        %v1549 = vunpack.c.l.b16 %v1478
        %v1550 = vunpack.c.l.b16 %v1479
        %v1551 = vunpack.c.l.b16 %v1480
        %v1552 = vunpack.c.l.b16 %v1481
        %v1553 = vunpack.c.l.b16 %v1482
        %v1554 = vunpack.c.l.b16 %v1483
        %v1555 = vunpack.c.l.b16 %v1484
        %v1556 = vunpack.c.l.b16 %v1485
        %v1557 = vpack.c.b16 %v1526, %v1525
        %v1558 = vpack.c.b16 %v1528, %v1527
        %v1559 = vpack.c.b16 %v1530, %v1529
        %v1560 = vpack.c.b16 %v1532, %v1531
        %v1561 = vpack.c.b16 %v1534, %v1533
        %v1562 = vpack.c.b16 %v1536, %v1535
        %v1563 = vpack.c.b16 %v1538, %v1537
        %v1564 = vpack.c.b16 %v1540, %v1539
        %v1565 = vpack.c.b16 %v1542, %v1541
        %v1566 = vpack.c.b16 %v1544, %v1543
        %v1567 = vpack.c.b16 %v1546, %v1545
        %v1568 = vpack.c.b16 %v1548, %v1547
        %v1569 = vpack.c.b16 %v1550, %v1549
        %v1570 = vpack.c.b16 %v1552, %v1551
        %v1571 = vpack.c.b16 %v1554, %v1553
        %v1572 = vpack.c.b16 %v1556, %v1555
        %1589 = vmatprep.subr.bf16.mxu0 0
        %1590 = vmatpush1.bf16.msra.mxu0 %v1564
        %1591 = vmatprep.subr.bf16.mxu0 0
        %1592 = vmatpush1.bf16.msra.mxu0 %v1563
        %1593 = vmatprep.subr.bf16.mxu0 0
        %1594 = vmatpush1.bf16.msra.mxu0 %v1562
        %1595 = vmatprep.subr.bf16.mxu0 0
        %1596 = vmatpush1.bf16.msra.mxu0 %v1561
        %1597 = vmatprep.subr.bf16.mxu0 0
        %1598 = vmatpush1.bf16.msra.mxu0 %v1560
        %1599 = vmatprep.subr.bf16.mxu0 0
        %1600 = vmatpush1.bf16.msra.mxu0 %v1559
        %1601 = vmatprep.subr.bf16.mxu0 0
        %1602 = vmatpush1.bf16.msra.mxu0 %v1558
        %1603 = vmatprep.subr.bf16.mxu0 0
        %1604 = vmatpush1.bf16.msra.mxu0 %v1557
        %1605 = vmatprep.subr.bf16.mxu0 0
        %1606 = vmatpush2.bf16.msra.mxu0 %v1572
        %1607 = vmatprep.subr.bf16.mxu0 0
        %1608 = vmatpush2.bf16.msra.mxu0 %v1571
        %1609 = vmatprep.subr.bf16.mxu0 0
        %1610 = vmatpush2.bf16.msra.mxu0 %v1570
        %1611 = vmatprep.subr.bf16.mxu0 0
        %1612 = vmatpush2.bf16.msra.mxu0 %v1569
        %1613 = vmatprep.subr.bf16.mxu0 0
        %1614 = vmatpush2.bf16.msra.mxu0 %v1568
        %1615 = vmatprep.subr.bf16.mxu0 0
        %1616 = vmatpush2.bf16.msra.mxu0 %v1567
        %1617 = vmatprep.subr.bf16.mxu0 0
        %1618 = vmatpush2.bf16.msra.mxu0 %v1566
        %1619 = vmatprep.subr.bf16.mxu0 0
        %1620 = vmatpush2.bf16.msra.mxu0 %v1565
        %1621 = vmatprep.mubr.bf16.mxu0 %v1453
        %1622 = vmatmul.mubr.bf16.gmra.mxu0 %v1452
        %v1623 = vpop.f32.mrf.mxu0
        %v1624 = vadd.f32 %v1491, %v1623
        %v1625 = vpop.f32.mrf.mxu0
        %v1626 = vpop.f32.mrf.mxu0
        %v1627 = vpop.f32.mrf.mxu0
        %1628 = vdwg.mxu0
        %v1637 = vunpack.c.l.b16 %v1325
        %v1638 = vunpack.c.l.b16 %v1326
        %v1639 = vunpack.c.l.b16 %v1327
        %v1640 = vunpack.c.l.b16 %v1328
        %v1641 = vunpack.c.l.b16 %v1329
        %v1642 = vunpack.c.l.b16 %v1330
        %v1643 = vunpack.c.l.b16 %v1331
        %v1644 = vunpack.c.l.b16 %v1332
        %v1645 = vpack.c.b16 %v1638, %v1637
        %v1646 = vpack.c.b16 %v1640, %v1639
        %v1647 = vpack.c.b16 %v1642, %v1641
        %v1648 = vpack.c.b16 %v1644, %v1643
        %v1654 = vsel %vm557, %v1324, 0
        %1656 = vmatprep.subr.bf16.mxu0 0
        %1657 = vmatpush1.bf16.msra.mxu0 0
        %1658 = vmatprep.subr.bf16.mxu0 0
        %1659 = vmatpush1.bf16.msra.mxu0 0
        %1660 = vmatprep.subr.bf16.mxu0 0
        %1661 = vmatpush1.bf16.msra.mxu0 0
        %1662 = vmatprep.subr.bf16.mxu0 0
        %1663 = vmatpush1.bf16.msra.mxu0 0
        %1664 = vmatprep.subr.bf16.mxu0 0
        %1665 = vmatpush1.bf16.msra.mxu0 %v1648
        %1666 = vmatprep.subr.bf16.mxu0 0
        %1667 = vmatpush1.bf16.msra.mxu0 %v1647
        %1668 = vmatprep.subr.bf16.mxu0 0
        %1669 = vmatpush1.bf16.msra.mxu0 %v1646
        %1670 = vmatprep.subr.bf16.mxu0 0
        %1671 = vmatpush1.bf16.msra.mxu0 %v1645
        %1672 = vmatprep.subr.bf16.mxu0 0
        %1673 = vmatpush2.bf16.msra.mxu0 0
        %1674 = vmatprep.subr.bf16.mxu0 0
        %1675 = vmatpush2.bf16.msra.mxu0 0
        %1676 = vmatprep.subr.bf16.mxu0 0
        %1677 = vmatpush2.bf16.msra.mxu0 0
        %1678 = vmatprep.subr.bf16.mxu0 0
        %1679 = vmatpush2.bf16.msra.mxu0 0
        %1680 = vmatprep.subr.bf16.mxu0 0
        %1681 = vmatpush2.bf16.msra.mxu0 0
        %1682 = vmatprep.subr.bf16.mxu0 0
        %1683 = vmatpush2.bf16.msra.mxu0 0
        %1684 = vmatprep.subr.bf16.mxu0 0
        %1685 = vmatpush2.bf16.msra.mxu0 0
        %1686 = vmatprep.subr.bf16.mxu0 0
        %1687 = vmatpush2.bf16.msra.mxu0 0
        %1688 = vmatprep.mubr.bf16.mxu0 0
        %1689 = vmatmul.mubr.bf16.gmra.mxu0 %v1654
        %v1690 = vpop.f32.mrf.mxu0
        %v1691 = vadd.f32 %v1624, %v1690
        %v1692 = vpop.f32.mrf.mxu0
        %v1693 = vpop.f32.mrf.mxu0
        %v1694 = vpop.f32.mrf.mxu0
        %1695 = vdwg.mxu0
        %v1696 = vadd.f32 %v1691, %v554
        %1697 = vst.msk [vmem:[#allocation2] sm:$0xff] %vm557, %v1696
        %p1698 = scmp.eq.s32.totalorder %s25, 1
        // Predicated region
        $region77: #{gptj_model.1} parent=71 // pred_check
          %p1699 = pneg %p1698
        $region78: #{gptj_model.1} parent=71 // pred_check_branch
          %1701 = sbr.rel (%p1699) target = $region80
        $region79: #{gptj_model.1} parent=71 // pred_region
          %v1702 = vld [vmem:[%s11] sm:$0x1]
          %v1703 = vld [vmem:[%s12] sm:$0x1]
          %v1704 = vsel %vm557, %v1696, 0.0
          %1705 = vadd.xlane.f32.xlu0 %v1704
          %v1706 = vpop.xlane.xlu0 %1705
          %v1707 = vmul.f32 %v1706, %v561
          %v1708 = vsub.f32 %v1696, %v1707
          %v1709 = vmul.f32 %v1708, %v1708
          %v1710 = vsel %vm557, %v1709, 0.0
          %1711 = vadd.xlane.f32.xlu0 %v1710
          %v1712 = vpop.xlane.xlu0 %1711
          %v1713 = vmul.f32 %v1712, %v561
          %v1714 = vadd.f32 %v1713, 1e-05
          %v1715 = vrsqrt.pop %v1714
          %v1716 = vmul.f32 %v1708, %v1715
          %v1718 = vlaneseq
          %v1719 = vshrl.u32 %v1718, 7
          %v1720 = vsub.s32 0, %v1719
          %v1721 = vrot.slane %v1702, %v1720
          %v1723 = vmul.f32 %v1716, %v1721
          %v1725 = vlaneseq
          %v1726 = vshrl.u32 %v1725, 7
          %v1727 = vsub.s32 0, %v1726
          %v1728 = vrot.slane %v1703, %v1727
          %v1730 = vadd.f32 %v1723, %v1728
          %1731 = vst.msk [vmem:[#allocation4] sm:$0xff] %vm557, %v1730
        $region80: #{gptj_model.1} parent=71 // pred_fallthru
          _
        // Predicated region
        $region81: #{gptj_model.1} parent=71 // pred_check
          %p1732 = pneg %p351
        $region82: #{gptj_model.1} parent=71 // pred_check_branch
          %1734 = sbr.rel (%p1732) target = $region84
        $region83: #{gptj_model.1} parent=71 // pred_region
          %s1736 = ssub.s32 128, 128
          %1737 = vsyncadd [#allocation5], %s1736
          %s1739 = sshll.u32 [#allocation4], 4
          %s1740 = int_to_ptr.vmem [resolvable:$true] %s1739
          %1742 = dma.vmem_to_hbm [thread:$0]  %s1740, 128, %s13, [#allocation5]
        $region84: #{gptj_model.1} parent=71 // pred_fallthru
          _
        // Predicated region
        $region85: #{gptj_model.1} parent=71 // pred_check
          %p1743 = pneg %p351
        $region86: #{gptj_model.1} parent=71 // pred_check_branch
          %1745 = sbr.rel (%p1743) target = $region88
        $region87: #{gptj_model.1} parent=71 // pred_region
          %1746 = dma.done [#allocation5], 128
        $region88: #{gptj_model.1} parent=71 // pred_fallthru
          _
      $region72: #{gptj_model.1} parent=5 // pred_fallthru
        _
      %p1747 = scmp.le.s32.totalorder 2, %s20
      // Predicated region
      $region89: #{gptj_model.1} parent=5 // pred_check
        %p1748 = pneg %p1747
      $region90: #{gptj_model.1} parent=5 // pred_check_branch
        %1750 = sbr.rel (%p1748) target = $region92
      $region91: #{gptj_model.1} parent=5 // pred_region
        %s1751 = ssub.s32 %s20, 2
      $region92: #{gptj_model.1} parent=5 // pred_fallthru
        _
    $region6: #{gptj_model.1} parent=1 // loop_footer
      %s24 = sadd.s32 1, %s20
    $region7: #{gptj_model.1} parent=1 // loop_footer_branch
      %19 = sbr.rel target = $region3
    $region8: #{gptj_model.1} parent=1 // loop_exit
      _
    %1752 = vsyncpa [#allocation5], 1
    %s1753 = scalar_lea.sflag [#allocation5], 1
    %1754 = vsyncpa %s1753, 1

</llo_original>
